<compile_context>
chip_gen: v5e
topology: v5e:2x2
jax: 0.10.0
libtpu: 0.0.40
codegen_flags: <defaults>
</compile_context>

<pallas_src>
import functools

import jax
import jax.numpy as jnp
from jax.experimental import pallas as pl
from jax.experimental.pallas import tpu as pltpu


FEAT_DIM = 512
DIMS = {"species": 128, "genus": 64, "family": 32}
HEAD_TOTAL = sum(DIMS.values())   # 224
HEAD_PAD = 256                    # lane-dense fused head width (multiple of 128)

LANE = 128
SUBLANE_F32 = 8
TK_CAP = 4096                     # max K-tile (bf16 weight block = 4 MiB)
TM_CAP = 256                      # max batch tile (matches 256-wide MXU)


def _round_up(n, m):
    return (n + m - 1) // m * m


def _cdiv(a, b):
    return (a + b - 1) // b


def _plan_k(K):
    """Static K-axis tiling plan (depends only on K, shared by prep & forward).

    Returns (n_split, k_steps, tk, k_pad) with k_pad = n_split * k_steps * tk.
    n_split is the leading core-parallel K split (2 TensorCores on v7x).
    """
    k_lane = _round_up(K, LANE)
    blocks = k_lane // LANE
    n_split = 2 if blocks >= 2 else 1
    half_blocks = _cdiv(blocks, n_split)          # 128-blocks per split
    k_steps = _cdiv(half_blocks, TK_CAP // LANE)  # sequential steps per split
    tk = _cdiv(half_blocks, k_steps) * LANE
    k_pad = n_split * k_steps * tk
    return n_split, k_steps, tk, k_pad


def _mlc_kernel(x_ref, wbb_ref, wh_ref, o_ref, acc_ref):
    """grid = (n_split, m_tiles, k_steps); last axis is the reduction."""
    k = pl.program_id(2)

    @pl.when(k == 0)
    def _():
        acc_ref[...] = jnp.zeros_like(acc_ref)

    # Backbone partial sum for this split: (tm, tk) x (tk, 512) -> f32 acc.
    # x streams as f32 from HBM; the bf16 cast is a VPU op hidden under DMA.
    acc_ref[...] += jnp.dot(x_ref[...].astype(jnp.bfloat16), wbb_ref[...],
                            preferred_element_type=jnp.float32)

    @pl.when(k == pl.num_programs(2) - 1)
    def _():
        # Fused heads: one lane-dense bf16 (tm, 512) x (512, 256) matmul.
        # Biases (backbone + heads) are folded into one constant added in the
        # wrapper after the cross-split sum, so heads(.) stays purely linear.
        o_ref[...] = jnp.dot(acc_ref[...].astype(jnp.bfloat16), wh_ref[...],
                             preferred_element_type=jnp.float32)


def prepare_params(params):
    """One-time weight prep (bf16 cast / pad / fuse). Done at param-load time,
    NOT per call -- the kernel is HBM-bound on the weight stream."""
    K = params["wbb"].shape[0]
    _, _, _, k_pad = _plan_k(K)

    wbb = params["wbb"].astype(jnp.bfloat16)                 # [K, 512]
    if k_pad != K:
        wbb = jnp.pad(wbb, ((0, k_pad - K), (0, 0)))         # zeros are inert

    # Fused head weight, lane-dense 224 -> 256 columns.
    wh_f32 = jnp.concatenate([params["w_species"].T,         # [512, 128]
                              params["w_genus"].T,           # [512, 64]
                              params["w_family"].T], axis=1)  # -> [512, 224]
    wh_f32 = jnp.pad(wh_f32, ((0, 0), (0, HEAD_PAD - HEAD_TOTAL)))

    bh = jnp.concatenate([params["b_species"],
                          params["b_genus"],
                          params["b_family"]])
    bh = jnp.pad(bh, (0, HEAD_PAD - HEAD_TOTAL)).reshape(1, HEAD_PAD)

    # Fold the backbone bias through the (linear) heads:
    #   (feats + bbb) @ Wh + bh == feats @ Wh + (bbb @ Wh + bh)
    bias_full = (jnp.dot(params["bbb"].reshape(1, FEAT_DIM), wh_f32,
                         precision=jax.lax.Precision.HIGHEST) + bh)

    return {
        "wbb": wbb,                                   # [k_pad, 512] bf16
        "wh": wh_f32.astype(jnp.bfloat16),            # [512, 256] bf16
        "bias": bias_full.astype(jnp.float32),        # [1, 256] f32
    }


@jax.jit
def multi_level_classifier(x, prepped):
    """x: [B, C, H, W] float32, prepped from `prepare_params`.
    Returns dict of logits (species / genus / family)."""
    B = x.shape[0]
    x_flat = x.reshape(B, -1)                 # NCHW -> [B, C*H*W], row-major
    K = x_flat.shape[1]

    n_split, k_steps, tk, k_pad = _plan_k(K)
    wbb = prepped["wbb"]
    assert wbb.shape[0] == k_pad, "params were prepared for a different K"

    # Batch tiling: prefer m_tiles == 1 so the weight stream is never
    # re-fetched per batch tile; cap tm at 256 (MXU width / VMEM budget).
    if B <= TM_CAP:
        tm = _round_up(B, SUBLANE_F32)
        b_pad = tm
    else:
        tm = TM_CAP
        b_pad = _round_up(B, tm)
    m_tiles = b_pad // tm

    if b_pad != B or k_pad != K:
        x_flat = jnp.pad(x_flat, ((0, b_pad - B), (0, k_pad - K)))

    out = pl.pallas_call(
        _mlc_kernel,
        out_shape=jax.ShapeDtypeStruct((n_split, b_pad, HEAD_PAD), jnp.float32),
        grid=(n_split, m_tiles, k_steps),
        in_specs=[
            # x: f32 activations, K split across the leading core axis.
            pl.BlockSpec((tm, tk), lambda s, i, k: (i, s * k_steps + k)),
            # wbb: each split streams only its disjoint half of the weight.
            pl.BlockSpec((tk, FEAT_DIM), lambda s, i, k: (s * k_steps + k, 0)),
            # fused head weight: tiny, resident.
            pl.BlockSpec((FEAT_DIM, HEAD_PAD), lambda s, i, k: (0, 0)),
        ],
        # Per-split partial head outputs (split axis squeezed in-kernel).
        out_specs=pl.BlockSpec((None, tm, HEAD_PAD), lambda s, i, k: (s, i, 0)),
        scratch_shapes=[pltpu.VMEM((tm, FEAT_DIM), jnp.float32)],  # feats acc
        compiler_params=pltpu.CompilerParams(
            dimension_semantics=("parallel", "parallel", "arbitrary"),
            vmem_limit_bytes=32 * 1024 * 1024),
    )(x_flat, wbb, prepped["wh"])

    # Cross-split reduction + folded bias (tiny [b_pad, 256] XLA ops).
    logits = out.sum(axis=0)[:B] + prepped["bias"]

    ds, dg, df = DIMS["species"], DIMS["genus"], DIMS["family"]
    return {
        "species": logits[:, :ds],
        "genus": logits[:, ds:ds + dg],
        "family": logits[:, ds + dg:ds + dg + df],
    }


def init_params(key, in_dim):
    """Deterministic PyTorch-style init (uniform +/- 1/sqrt(fan_in))."""
    ks = jax.random.split(key, 8)

    def lin(kw, kb, fan_in, fan_out):
        bound = 1.0 / jnp.sqrt(fan_in)
        w = jax.random.uniform(kw, (fan_out, fan_in), jnp.float32, -bound, bound)
        b = jax.random.uniform(kb, (fan_out,), jnp.float32, -bound, bound)
        return w, b

    bb_bound = 1.0 / jnp.sqrt(in_dim)
    wbb = jax.random.uniform(ks[0], (in_dim, FEAT_DIM), jnp.float32,
                             -bb_bound, bb_bound)
    bbb = jax.random.uniform(ks[1], (FEAT_DIM,), jnp.float32,
                             -bb_bound, bb_bound)

    w_s, b_s = lin(ks[2], ks[3], FEAT_DIM, DIMS["species"])
    w_g, b_g = lin(ks[4], ks[5], FEAT_DIM, DIMS["genus"])
    w_f, b_f = lin(ks[6], ks[7], FEAT_DIM, DIMS["family"])

    return {
        "wbb": wbb, "bbb": bbb,
        "w_species": w_s, "b_species": b_s,
        "w_genus": w_g, "b_genus": b_g,
        "w_family": w_f, "b_family": b_f,
    }


def _reference_f32(x, params):
    """Pure f32 reference (PyTorch module semantics)."""
    B = x.shape[0]
    hi = jax.lax.Precision.HIGHEST
    feats = jnp.dot(x.reshape(B, -1), params["wbb"], precision=hi) + params["bbb"]
    return {
        "species": jnp.dot(feats, params["w_species"].T, precision=hi) + params["b_species"],
        "genus": jnp.dot(feats, params["w_genus"].T, precision=hi) + params["b_genus"],
        "family": jnp.dot(feats, params["w_family"].T, precision=hi) + params["b_family"],
    }


def _reference_quantized(x, params):
    """Same precision recipe as the kernel: bf16 x/wbb/feats/head-weights,
    f32 accumulation, f32 biases (folded bias == separate biases, heads are
    linear)."""
    B = x.shape[0]
    hi = jax.lax.Precision.HIGHEST
    xq = x.reshape(B, -1).astype(jnp.bfloat16).astype(jnp.float32)
    wq = params["wbb"].astype(jnp.bfloat16).astype(jnp.float32)
    feats = jnp.dot(xq, wq, precision=hi)
    fq = feats.astype(jnp.bfloat16).astype(jnp.float32)

    def head(w, b):
        whq = w.T.astype(jnp.bfloat16).astype(jnp.float32)
        bias = jnp.dot(params["bbb"], w.T, precision=hi) + b
        return jnp.dot(fq, whq, precision=hi) + bias

    return {
        "species": head(params["w_species"], params["b_species"]),
        "genus": head(params["w_genus"], params["b_genus"]),
        "family": head(params["w_family"], params["b_family"]),
    }


if __name__ == "__main__":
    key = jax.random.PRNGKey(0)
    kx, kp = jax.random.split(key)

    B, C, H, W = 2, 4, 16, 16
    x = jax.random.normal(kx, (B, C, H, W), jnp.float32)
    raw_params = init_params(kp, C * H * W)

    prepped = prepare_params(raw_params)          # one-time weight prep
    out = multi_level_classifier(x, prepped)
    out = jax.block_until_ready(out)

    ref_q = _reference_quantized(x, raw_params)   # kernel-precision reference
    ref_f = _reference_f32(x, raw_params)         # full-f32 module semantics

    for name in ("species", "genus", "family"):
        assert out[name].shape == (B, DIMS[name]), (name, out[name].shape)
        err_q = float(jnp.max(jnp.abs(out[name] - ref_q[name])))
        assert err_q < 1e-2, ("quantized-ref mismatch", name, err_q)
        err_f = float(jnp.max(jnp.abs(out[name] - ref_f[name])))
        assert err_f < 2.5e-2, ("f32-ref mismatch", name, err_f)

    print("KERNEL_OK")
</pallas_src>

<mosaic_0001>
module attributes {stable_mosaic.version = 11 : i64} {
  func.func @_mlc_kernel(%arg0: i32, %arg1: i32, %arg2: i32, %arg3: memref<8x512xf32, #tpu.memory_space<vmem>>, %arg4: memref<512x512xbf16, #tpu.memory_space<vmem>>, %arg5: memref<512x256xbf16, #tpu.memory_space<vmem>>, %arg6: memref<1x8x256xf32, #tpu.memory_space<vmem>>, %arg7: memref<8x512xf32, #tpu.memory_space<vmem>>) attributes {dimension_semantics = [#tpu.dimension_semantics<parallel>, #tpu.dimension_semantics<parallel>, #tpu.dimension_semantics<arbitrary>], iteration_bounds = array<i64: 2, 1, 1>, scalar_prefetch = 0 : i64, scratch_operands = 1 : i64, tpu.core_type = #tpu.core_type<tc>, window_params = [{transform_indices = @transform_0, window_bounds = array<i64: 8, 512>}, {transform_indices = @transform_1, window_bounds = array<i64: 512, 512>}, {pipeline_mode = #tpu.pipeline_mode<synchronous>, transform_indices = @transform_2, window_bounds = array<i64: 512, 256>}, {transform_indices = @transform_3, window_bounds = array<i64: 1, 8, 256>}]} {
    %c0_i32 = arith.constant 0 : i32
    %0 = arith.cmpi eq, %arg2, %c0_i32 : i32
    %1 = arith.extui %0 : i1 to i32
    %c0_i32_0 = arith.constant 0 : i32
    %2 = arith.cmpi ne, %1, %c0_i32_0 : i32
    scf.if %2 {
      %cst_10 = arith.constant 0.000000e+00 : f32
      %13 = vector.broadcast %cst_10 : f32 to vector<8x512xf32>
      %c0_11 = arith.constant 0 : index
      %c0_12 = arith.constant 0 : index
      %14 = vector.load %arg7[%c0_11, %c0_12] : memref<8x512xf32, #tpu.memory_space<vmem>>, vector<8x512xf32>
      tpu.vector_store %arg7[%c0_11, %c0_12], %13 {strides = array<i32>} : memref<8x512xf32, #tpu.memory_space<vmem>>, vector<8x512xf32>,
    } else {
    }
    %c0 = arith.constant 0 : index
    %c0_1 = arith.constant 0 : index
    %3 = vector.load %arg7[%c0, %c0_1] : memref<8x512xf32, #tpu.memory_space<vmem>>, vector<8x512xf32>
    %c0_2 = arith.constant 0 : index
    %c0_3 = arith.constant 0 : index
    %4 = vector.load %arg3[%c0_2, %c0_3] : memref<8x512xf32, #tpu.memory_space<vmem>>, vector<8x512xf32>
    %5 = arith.truncf %4 : vector<8x512xf32> to vector<8x512xbf16>
    %c0_4 = arith.constant 0 : index
    %c0_5 = arith.constant 0 : index
    %6 = vector.load %arg4[%c0_4, %c0_5] : memref<512x512xbf16, #tpu.memory_space<vmem>>, vector<512x512xbf16>
    %cst = arith.constant dense<0.000000e+00> : vector<8x512xf32>
    %7 = tpu.matmul %5, %6, %cst {dimension_numbers = #tpu.dot_dimension_numbers<[1], [0], [0], [1], [0, 0, 1, 1], [], []>} : vector<8x512xbf16>, vector<512x512xbf16>, vector<8x512xf32> -> vector<8x512xf32>
    %8 = arith.addf %3, %7 : vector<8x512xf32>
    %c0_6 = arith.constant 0 : index
    %c0_7 = arith.constant 0 : index
    %9 = vector.load %arg7[%c0_6, %c0_7] : memref<8x512xf32, #tpu.memory_space<vmem>>, vector<8x512xf32>
    tpu.vector_store %arg7[%c0_6, %c0_7], %8 {strides = array<i32>} : memref<8x512xf32, #tpu.memory_space<vmem>>, vector<8x512xf32>,
    %c0_i32_8 = arith.constant 0 : i32
    %10 = arith.cmpi eq, %arg2, %c0_i32_8 : i32
    %11 = arith.extui %10 : i1 to i32
    %c0_i32_9 = arith.constant 0 : i32
    %12 = arith.cmpi ne, %11, %c0_i32_9 : i32
    scf.if %12 {
      %c0_10 = arith.constant 0 : index
      %c0_11 = arith.constant 0 : index
      %13 = vector.load %arg7[%c0_10, %c0_11] : memref<8x512xf32, #tpu.memory_space<vmem>>, vector<8x512xf32>
      %14 = arith.truncf %13 : vector<8x512xf32> to vector<8x512xbf16>
      %c0_12 = arith.constant 0 : index
      %c0_13 = arith.constant 0 : index
      %15 = vector.load %arg5[%c0_12, %c0_13] : memref<512x256xbf16, #tpu.memory_space<vmem>>, vector<512x256xbf16>
      %cst_14 = arith.constant dense<0.000000e+00> : vector<8x256xf32>
      %16 = tpu.matmul %14, %15, %cst_14 {dimension_numbers = #tpu.dot_dimension_numbers<[1], [0], [0], [1], [0, 0, 1, 1], [], []>} : vector<8x512xbf16>, vector<512x256xbf16>, vector<8x256xf32> -> vector<8x256xf32>
      %c0_15 = arith.constant 0 : index
      %c0_16 = arith.constant 0 : index
      %c0_17 = arith.constant 0 : index
      %17 = vector.load %arg6[%c0_15, %c0_16, %c0_17] : memref<1x8x256xf32, #tpu.memory_space<vmem>>, vector<1x8x256xf32>
      %18 = vector.shape_cast %17 : vector<1x8x256xf32> to vector<8x256xf32>
      %19 = vector.shape_cast %16 : vector<8x256xf32> to vector<1x8x256xf32>
      tpu.vector_store %arg6[%c0_15, %c0_16, %c0_17], %19 {strides = array<i32>} : memref<1x8x256xf32, #tpu.memory_space<vmem>>, vector<1x8x256xf32>,
    } else {
    }
    return
  }
  func.func @transform_0(%arg0: i32, %arg1: i32, %arg2: i32) -> (i32, i32) {
    %c1_i32 = arith.constant 1 : i32
    %0 = arith.muli %arg0, %c1_i32 : i32
    %1 = arith.addi %0, %arg2 : i32
    %c0_i32 = arith.constant 0 : i32
    return %arg1, %1 : i32, i32
  }
  func.func @transform_1(%arg0: i32, %arg1: i32, %arg2: i32) -> (i32, i32) {
    %c1_i32 = arith.constant 1 : i32
    %0 = arith.muli %arg0, %c1_i32 : i32
    %1 = arith.addi %0, %arg2 : i32
    %c0_i32 = arith.constant 0 : i32
    %c0_i32_0 = arith.constant 0 : i32
    return %1, %c0_i32 : i32, i32
  }
  func.func @transform_2(%arg0: i32, %arg1: i32, %arg2: i32) -> (i32, i32) {
    %c0_i32 = arith.constant 0 : i32
    %c0_i32_0 = arith.constant 0 : i32
    %c0_i32_1 = arith.constant 0 : i32
    return %c0_i32, %c0_i32_0 : i32, i32
  }
  func.func @transform_3(%arg0: i32, %arg1: i32, %arg2: i32) -> (i32, i32, i32) {
    %c0_i32 = arith.constant 0 : i32
    %c0_i32_0 = arith.constant 0 : i32
    return %arg0, %arg1, %c0_i32 : i32, i32, i32
  }
}

</mosaic_0001>

<llo_original>
// kernel: multi_level_classifier.1
$region0: #{multi_level_classifier.1}
  #allocation0 [shape = 'u32[]', space=smem, size = 0x4, offset = 0x4, fixed_abs, tag = 'smem constant byte address 0x4 - core index']
  #allocation1 [shape = 'u32[72,128]{1,0:T(1,128)}', space=vmem, size = 0x9000, scoped, tag = 'internal scratch']
  #allocation2 [shape = 'f32[8,512]{1,0:T(8,128)}', space=vmem, size = 0x4000, scoped, tag = 'scratch operand']
  %s0 = inlined_call_operand.vmem [shape: f32[8,1024], index: 0, kind: input, shape index: {}]
  %s1 = inlined_call_operand.hbm [shape: bf16[1024,512], index: 1, kind: input, shape index: {}]
  %s2 = inlined_call_operand.hbm [shape: bf16[512,256], index: 2, kind: input, shape index: {}]
  %s3 = inlined_call_operand.vmem [shape: f32[2,8,256], index: 3, kind: output, shape index: {}]
  %s4 = sld [smem:[#allocation0]]
  $region61: #{multi_level_classifier.1} parent=0
    _
  %s6 = ssub.s32 1, %s4
  %s7 = scalar_select 0, %s6, %s4
  $region1: #{multi_level_classifier.1} parent=0
    #allocation3 [shape = 'u8[1048576]{0}', space=vmem, size = 0x100000, scoped, tag = 'input window, operand 1']
    #allocation4 [shape = 's32[2]{0}', space=sflag, size = 0x8, scoped, tag = 'scoped memory for multi_level_classifier.1']
    #allocation5 [shape = 'u8[262144]{0}', space=vmem, size = 0x40000, scoped, tag = 'input window, operand 2, single buffered']
    #allocation6 [shape = 's32[1]{0}', space=sflag, size = 0x4, scoped, tag = 'scoped memory for multi_level_classifier.1']
    %8 = vsyncpa [#allocation4], 0
    %s9 = scalar_lea.sflag [#allocation4], 1
    %10 = vsyncpa %s9, 0
    %11 = vsyncpa [#allocation6], 0
    loop: start=0, step=1, limit=4
    $region2: #{multi_level_classifier.1} parent=1 // loop_pre_header
      _
    $region3: #{multi_level_classifier.1} parent=1 // loop_header
      %s13 = sphi 0, %s17
      %p14 = scmp.ge.s32.totalorder %s13, 4
      %s20 = sphi 0, %s39
      %s21 = sphi 0, %s35
      %s22 = sphi 0, %s31
      %s23 = sphi 0, %s20
      %s24 = sphi 0, %s21
      %s25 = sphi 0, %s22
      %s26 = sphi 0, %s23
      %s27 = sphi 0, %s24
      %s28 = sphi 0, %s25
      %s46 = sphi 0, %s48
      %s49 = sphi 0, %s46
      %s50 = sphi 0, %s49
      %s66 = sphi 0, %s50
      %s74 = sphi 0, %s76
      %s77 = sphi 0, %s74
      %s78 = sphi 0, %s77
      %s94 = sphi 0, %s78
      %s98 = sphi 0, %s98
      %s100 = sphi 0, %s98
      %s101 = sphi 0, %s100
      %s115 = sphi 0, %s101
      %s123 = sphi 0, %s125
      %s126 = sphi 0, %s123
      %s127 = sphi 0, %s126
      %s143 = sphi 0, %s127
    $region4: #{multi_level_classifier.1} parent=1 // loop_header_branch
      %16 = sbr.rel (%p14) target = $region8
    $region5: #{multi_level_classifier.1} parent=1 // loop_body
      %s18 = ssub.s32 %s13, 1
      %s19 = ssub.s32 %s13, 2
      %s29 = sadd.s32 1, %s22
      %p30 = scmp.ge.s32.totalorder %s29, 1
      %s31 = scalar_select %p30, 0, %s29
      %s32 = sadd.s32 1, %s21
      %s33 = scalar_select %p30, %s32, %s21
      %p34 = scmp.ge.s32.totalorder %s33, 1
      %s35 = scalar_select %p34, 0, %s33
      %s36 = sadd.s32 1, %s20
      %s37 = scalar_select %p34, %s36, %s20
      %p38 = scmp.ge.s32.totalorder %s37, 2
      %s39 = scalar_select %p38, 0, %s37
      %s40 = sadd.s32 %s20, %s22
      %s41 = sadd.s32 %s39, %s31
      %s42 = ssub.s32 %s21, %s35
      %s43 = ssub.s32 %s40, %s41
      %s44 = sor.u32 %s42, %s43
      %p45 = scmp.eq.s32.totalorder %s44, 0
      %s47 = sadd.s32 %s46, 1
      %s48 = scalar_select %p45, %s46, %s47
      %p51 = pneg %p45
      %p52 = scmp.eq.s32.totalorder %s13, 1
      %p53 = por %p51, %p52
      %p54 = scmp.ne.s32.totalorder %s46, %s49
      %p55 = scmp.eq.s32.totalorder %s13, 0
      %p56 = por %p54, %p55
      %p57 = scmp.ne.s32.totalorder %s46, %s49
      %p58 = scmp.eq.s32.totalorder %s18, 1
      %p59 = por %p57, %p58
      %p60 = scmp.ne.s32.totalorder %s49, %s50
      %p61 = scmp.eq.s32.totalorder %s18, 0
      %p62 = por %p60, %p61
      %p63 = scmp.ne.s32.totalorder %s49, %s50
      %p64 = scmp.eq.s32.totalorder %s19, 1
      %p65 = por %p63, %p64
      %p67 = scmp.ne.s32.totalorder %s50, %s66
      %p68 = scmp.eq.s32.totalorder %s19, 0
      %p69 = por %p67, %p68
      %s70 = sadd.s32 %s20, %s22
      %s71 = sadd.s32 %s39, %s31
      %s72 = ssub.s32 %s70, %s71
      %p73 = scmp.eq.s32.totalorder %s72, 0
      %s75 = sadd.s32 %s74, 1
      %s76 = scalar_select %p73, %s74, %s75
      %p79 = pneg %p73
      %p80 = scmp.eq.s32.totalorder %s13, 1
      %p81 = por %p79, %p80
      %p82 = scmp.ne.s32.totalorder %s74, %s77
      %p83 = scmp.eq.s32.totalorder %s13, 0
      %p84 = por %p82, %p83
      %p85 = scmp.ne.s32.totalorder %s74, %s77
      %p86 = scmp.eq.s32.totalorder %s18, 1
      %p87 = por %p85, %p86
      %p88 = scmp.ne.s32.totalorder %s77, %s78
      %p89 = scmp.eq.s32.totalorder %s18, 0
      %p90 = por %p88, %p89
      %p91 = scmp.ne.s32.totalorder %s77, %s78
      %p92 = scmp.eq.s32.totalorder %s19, 1
      %p93 = por %p91, %p92
      %p95 = scmp.ne.s32.totalorder %s78, %s94
      %p96 = scmp.eq.s32.totalorder %s19, 0
      %p97 = por %p95, %p96
      %s99 = sadd.s32 %s98, 1
      %p102 = scmp.eq.s32.totalorder %s13, 1
      %p103 = scmp.ne.s32.totalorder %s98, %s100
      %p104 = scmp.eq.s32.totalorder %s13, 0
      %p105 = por %p103, %p104
      %p106 = scmp.ne.s32.totalorder %s98, %s100
      %p107 = scmp.eq.s32.totalorder %s18, 1
      %p108 = por %p106, %p107
      %p109 = scmp.ne.s32.totalorder %s100, %s101
      %p110 = scmp.eq.s32.totalorder %s18, 0
      %p111 = por %p109, %p110
      %p112 = scmp.ne.s32.totalorder %s100, %s101
      %p113 = scmp.eq.s32.totalorder %s19, 1
      %p114 = por %p112, %p113
      %p116 = scmp.ne.s32.totalorder %s101, %s115
      %p117 = scmp.eq.s32.totalorder %s19, 0
      %p118 = por %p116, %p117
      %s119 = ssub.s32 %s20, %s39
      %s120 = ssub.s32 %s21, %s35
      %s121 = sor.u32 %s119, %s120
      %p122 = scmp.eq.s32.totalorder %s121, 0
      %s124 = sadd.s32 %s123, 1
      %s125 = scalar_select %p122, %s123, %s124
      %p128 = pneg %p122
      %p129 = scmp.eq.s32.totalorder %s13, 1
      %p130 = por %p128, %p129
      %p131 = scmp.ne.s32.totalorder %s123, %s126
      %p132 = scmp.eq.s32.totalorder %s13, 0
      %p133 = por %p131, %p132
      %p134 = scmp.ne.s32.totalorder %s123, %s126
      %p135 = scmp.eq.s32.totalorder %s18, 1
      %p136 = por %p134, %p135
      %p137 = scmp.ne.s32.totalorder %s126, %s127
      %p138 = scmp.eq.s32.totalorder %s18, 0
      %p139 = por %p137, %p138
      %p140 = scmp.ne.s32.totalorder %s126, %s127
      %p141 = scmp.eq.s32.totalorder %s19, 1
      %p142 = por %p140, %p141
      %p144 = scmp.ne.s32.totalorder %s127, %s143
      %p145 = scmp.eq.s32.totalorder %s19, 0
      %p146 = por %p144, %p145
      %p147 = scmp.le.s32.totalorder 1, %s13
      %p148 = scmp.lt.s32.totalorder %s13, 3
      %p149 = pnand %p147, %p148
      %p150 = pneg %p149
      // Predicated region
      $region9: #{multi_level_classifier.1} parent=5 // pred_check
        _
      $region10: #{multi_level_classifier.1} parent=5 // pred_check_branch
        %152 = sbr.rel (%p149) target = $region12
      $region11: #{multi_level_classifier.1} parent=5 // pred_region
        %s153 = ssub.s32 %s13, 1
        // Predicated region
        $region13: #{multi_level_classifier.1} parent=11 // pred_check
          %p154 = pneg %p111
        $region14: #{multi_level_classifier.1} parent=11 // pred_check_branch
          %156 = sbr.rel (%p154) target = $region16
        $region15: #{multi_level_classifier.1} parent=11 // pred_region
          %158 = vsyncadd [#allocation6], 0
          %s159 = sshll.u32 %s2, 4
          %s160 = int_to_ptr.hbm [resolvable:$true] %s159
          %s161 = sshll.u32 [#allocation5], 4
          %s162 = int_to_ptr.vmem [resolvable:$true] %s161
          %167 = dma.hbm_to_vmem [thread:$0]  %s160, 8192, %s162, [#allocation6], 128, 128, 8
        $region16: #{multi_level_classifier.1} parent=11 // pred_fallthru
          _
      $region12: #{multi_level_classifier.1} parent=5 // pred_fallthru
        _
      %p168 = scmp.lt.s32.totalorder %s13, 2
      // Predicated region
      $region17: #{multi_level_classifier.1} parent=5 // pred_check
        %p169 = pneg %p168
      $region18: #{multi_level_classifier.1} parent=5 // pred_check_branch
        %171 = sbr.rel (%p169) target = $region20
      $region19: #{multi_level_classifier.1} parent=5 // pred_region
        // Predicated region
        $region21: #{multi_level_classifier.1} parent=19 // pred_check
          %p172 = pneg %p56
        $region22: #{multi_level_classifier.1} parent=19 // pred_check_branch
          %174 = sbr.rel (%p172) target = $region24
        $region23: #{multi_level_classifier.1} parent=19 // pred_region
          %s175 = sadd.s32 %s20, %s22
          %s176 = smul.u32 4, %s175
          %p177 = scmp.lt.s32.totalorder %s21, 0
          %s178 = scalar_select %p177, %s21, 0
          %p179 = scmp.lt.s32.totalorder %s176, 7
          %s180 = scalar_select %p179, %s176, 7
          %s181 = smul.addr %s178, 8
          %s182 = sadd.s32 %s180, %s181
          %s183 = smul.addr %s182, 8
          %s184 = scalar_lea.vmem %s0, %s183
          %s185 = sadd.s32 %s20, %s22
          %s186 = smul.u32 4, %s185
        $region24: #{multi_level_classifier.1} parent=19 // pred_fallthru
          _
        // Predicated region
        $region25: #{multi_level_classifier.1} parent=19 // pred_check
          %p187 = pneg %p84
        $region26: #{multi_level_classifier.1} parent=19 // pred_check_branch
          %189 = sbr.rel (%p187) target = $region28
        $region27: #{multi_level_classifier.1} parent=19 // pred_region
          %s190 = sand.u32 %s74, 1
          %s191 = scalar_lea.sflag [#allocation4], %s190
          %s192 = sand.u32 %s74, 1
          %s193 = smul.addr %s192, 1024
          %s194 = scalar_lea.vmem [#allocation3], %s193
          %s195 = sadd.s32 %s20, %s22
          %s196 = smul.u32 64, %s195
          %198 = vsyncadd %s191, 0
          %s199 = smul.addr %s196, 4
          %s200 = smul.addr %s199, 4
          %s201 = scalar_lea.hbm %s1, %s200
          %s202 = sshll.u32 %s201, 4
          %s203 = int_to_ptr.hbm [resolvable:$true] %s202
          %s204 = sshll.u32 %s194, 4
          %s205 = int_to_ptr.vmem [resolvable:$true] %s204
          %210 = dma.hbm_to_vmem [thread:$0]  %s203, 16384, %s205, %s191, 256, 256, 16
        $region28: #{multi_level_classifier.1} parent=19 // pred_fallthru
          _
      $region20: #{multi_level_classifier.1} parent=5 // pred_fallthru
        _
      %p211 = scmp.le.s32.totalorder 1, %s13
      %p212 = scmp.lt.s32.totalorder %s13, 3
      %p213 = pnand %p211, %p212
      %p214 = pneg %p213
      // Predicated region
      $region29: #{multi_level_classifier.1} parent=5 // pred_check
        _
      $region30: #{multi_level_classifier.1} parent=5 // pred_check_branch
        %216 = sbr.rel (%p213) target = $region32
      $region31: #{multi_level_classifier.1} parent=5 // pred_region
        %s217 = ssub.s32 %s13, 1
        %s218 = sand.u32 %s77, 1
        %s219 = scalar_lea.sflag [#allocation4], %s218
        %s220 = sand.u32 %s77, 1
        %s221 = smul.addr %s220, 1024
        %s222 = scalar_lea.vmem [#allocation3], %s221
        // Predicated region
        $region33: #{multi_level_classifier.1} parent=31 // pred_check
          %p223 = pneg %p90
        $region34: #{multi_level_classifier.1} parent=31 // pred_check_branch
          %225 = sbr.rel (%p223) target = $region36
        $region35: #{multi_level_classifier.1} parent=31 // pred_region
          %227 = dma.done %s219, 16384
        $region36: #{multi_level_classifier.1} parent=31 // pred_fallthru
          _
        // Predicated region
        $region37: #{multi_level_classifier.1} parent=31 // pred_check
          %p228 = pneg %p111
        $region38: #{multi_level_classifier.1} parent=31 // pred_check_branch
          %230 = sbr.rel (%p228) target = $region40
        $region39: #{multi_level_classifier.1} parent=31 // pred_region
          %232 = dma.done [#allocation6], 8192
        $region40: #{multi_level_classifier.1} parent=31 // pred_fallthru
          _
        %s233 = sadd.s32 %s23, %s25
        %s234 = smul.u32 4, %s233
        %p235 = scmp.lt.s32.totalorder %s24, 0
        %s236 = scalar_select %p235, %s24, 0
        %p237 = scmp.lt.s32.totalorder %s234, 7
        %s238 = scalar_select %p237, %s234, 7
        %s239 = smul.addr %s236, 8
        %s240 = sadd.s32 %s238, %s239
        %s241 = smul.addr %s240, 8
        %s242 = scalar_lea.vmem %s0, %s241
        %p243 = pneg %p62
        %p244 = pneg %p59
        %s245 = sand.u32 %s77, 1
        %s246 = scalar_lea.sflag [#allocation4], %s245
        %s247 = sand.u32 %s77, 1
        %s248 = smul.addr %s247, 1024
        %s249 = scalar_lea.vmem [#allocation3], %s248
        %p250 = pneg %p90
        %p251 = pneg %p87
        %p252 = pneg %p111
        %p253 = pneg %p108
        %p254 = pneg %p139
        %p255 = pneg %p136
        %p256 = scmp.lt.s32.totalorder %s23, 1
        %s257 = scalar_select %p256, %s23, 1
        %p258 = scmp.lt.s32.totalorder %s24, 0
        %s259 = scalar_select %p258, %s24, 0
        %s260 = smul.addr %s259, 2
        %s261 = smul.addr %s257, 2
        %s262 = sadd.s32 %s260, %s261
        %s263 = smul.addr %s262, 8
        %s264 = scalar_lea.vmem %s3, %s263
        %s265 = sadd.s32 %s23, %s25
        %s266 = smul.u32 4, %s265
        %p267 = scmp.lt.s32.totalorder %s24, 0
        %s268 = scalar_select %p267, %s24, 0
        %p269 = scmp.lt.s32.totalorder %s266, 7
        %s270 = scalar_select %p269, %s266, 7
        %s271 = smul.addr %s268, 8
        %s272 = sadd.s32 %s270, %s271
        %s273 = smul.addr %s272, 8
        %s274 = scalar_lea.vmem %s0, %s273
        %s275 = sadd.s32 %s23, %s25
        %s276 = smul.u32 4, %s275
        %s277 = sadd.s32 %s23, %s25
        %s278 = smul.u32 64, %s277
        %p279 = scmp.lt.s32.totalorder %s23, 1
        %s280 = scalar_select %p279, %s23, 1
        %p281 = scmp.lt.s32.totalorder %s24, 0
        %s282 = scalar_select %p281, %s24, 0
        %s283 = smul.addr %s282, 2
        %s284 = smul.addr %s280, 2
        %s285 = sadd.s32 %s283, %s284
        %s286 = smul.addr %s285, 8
        %s287 = scalar_lea.vmem %s3, %s286
        %p288 = scmp.eq.s32.totalorder %s25, 0
        // Predicated region
        $region41: #{multi_level_classifier.1} parent=31 // pred_check
          %p289 = pneg %p288
        $region42: #{multi_level_classifier.1} parent=31 // pred_check_branch
          %291 = sbr.rel (%p289) target = $region44
        $region43: #{multi_level_classifier.1} parent=31 // pred_region
          %292 = vst [vmem:[#allocation2] sm:$0xff] 0.0
          %293 = vst [vmem:[#allocation2 + $0x8] sm:$0xff] 0.0
          %294 = vst [vmem:[#allocation2 + $0x10] sm:$0xff] 0.0
          %295 = vst [vmem:[#allocation2 + $0x18] sm:$0xff] 0.0
        $region44: #{multi_level_classifier.1} parent=31 // pred_fallthru
          _
        %v296 = vld [vmem:[#allocation2] sm:$0xff]
        %v297 = vld [vmem:[#allocation2 + $0x8] sm:$0xff]
        %v298 = vld [vmem:[#allocation2 + $0x10] sm:$0xff]
        %v299 = vld [vmem:[#allocation2 + $0x18] sm:$0xff]
        %v300 = vld [vmem:[%s274] sm:$0xff]
        %v301 = vld [vmem:[%s274 + $0x8] sm:$0xff]
        %v302 = vld [vmem:[%s274 + $0x10] sm:$0xff]
        %v303 = vld [vmem:[%s274 + $0x18] sm:$0xff]
        %v304 = vpack.c.bf16 %v300, %v300
        %v305 = vpack.c.bf16 %v301, %v301
        %v306 = vpack.c.bf16 %v302, %v302
        %v307 = vpack.c.bf16 %v303, %v303
        %v308 = vld [vmem:[%s222] sm:$0xff]
        %v309 = vld [vmem:[%s222 + $0x8] sm:$0xff]
        %v310 = vld [vmem:[%s222 + $0x10] sm:$0xff]
        %v311 = vld [vmem:[%s222 + $0x18] sm:$0xff]
        %v312 = vld [vmem:[%s222 + $0x20] sm:$0xff]
        %v313 = vld [vmem:[%s222 + $0x28] sm:$0xff]
        %v314 = vld [vmem:[%s222 + $0x30] sm:$0xff]
        %v315 = vld [vmem:[%s222 + $0x38] sm:$0xff]
        %v316 = vld [vmem:[%s222 + $0x40] sm:$0xff]
        %v317 = vld [vmem:[%s222 + $0x48] sm:$0xff]
        %v318 = vld [vmem:[%s222 + $0x50] sm:$0xff]
        %v319 = vld [vmem:[%s222 + $0x58] sm:$0xff]
        %v320 = vld [vmem:[%s222 + $0x60] sm:$0xff]
        %v321 = vld [vmem:[%s222 + $0x68] sm:$0xff]
        %v322 = vld [vmem:[%s222 + $0x70] sm:$0xff]
        %v323 = vld [vmem:[%s222 + $0x78] sm:$0xff]
        %v324 = vld [vmem:[%s222 + $0x80] sm:$0xff]
        %v325 = vld [vmem:[%s222 + $0x88] sm:$0xff]
        %v326 = vld [vmem:[%s222 + $0x90] sm:$0xff]
        %v327 = vld [vmem:[%s222 + $0x98] sm:$0xff]
        %v328 = vld [vmem:[%s222 + $0xa0] sm:$0xff]
        %v329 = vld [vmem:[%s222 + $0xa8] sm:$0xff]
        %v330 = vld [vmem:[%s222 + $0xb0] sm:$0xff]
        %v331 = vld [vmem:[%s222 + $0xb8] sm:$0xff]
        %v332 = vld [vmem:[%s222 + $0xc0] sm:$0xff]
        %v333 = vld [vmem:[%s222 + $0xc8] sm:$0xff]
        %v334 = vld [vmem:[%s222 + $0xd0] sm:$0xff]
        %v335 = vld [vmem:[%s222 + $0xd8] sm:$0xff]
        %v336 = vld [vmem:[%s222 + $0xe0] sm:$0xff]
        %v337 = vld [vmem:[%s222 + $0xe8] sm:$0xff]
        %v338 = vld [vmem:[%s222 + $0xf0] sm:$0xff]
        %v339 = vld [vmem:[%s222 + $0xf8] sm:$0xff]
        %v340 = vld [vmem:[%s222 + $0x100] sm:$0xff]
        %v341 = vld [vmem:[%s222 + $0x108] sm:$0xff]
        %v342 = vld [vmem:[%s222 + $0x110] sm:$0xff]
        %v343 = vld [vmem:[%s222 + $0x118] sm:$0xff]
        %v344 = vld [vmem:[%s222 + $0x120] sm:$0xff]
        %v345 = vld [vmem:[%s222 + $0x128] sm:$0xff]
        %v346 = vld [vmem:[%s222 + $0x130] sm:$0xff]
        %v347 = vld [vmem:[%s222 + $0x138] sm:$0xff]
        %v348 = vld [vmem:[%s222 + $0x140] sm:$0xff]
        %v349 = vld [vmem:[%s222 + $0x148] sm:$0xff]
        %v350 = vld [vmem:[%s222 + $0x150] sm:$0xff]
        %v351 = vld [vmem:[%s222 + $0x158] sm:$0xff]
        %v352 = vld [vmem:[%s222 + $0x160] sm:$0xff]
        %v353 = vld [vmem:[%s222 + $0x168] sm:$0xff]
        %v354 = vld [vmem:[%s222 + $0x170] sm:$0xff]
        %v355 = vld [vmem:[%s222 + $0x178] sm:$0xff]
        %v356 = vld [vmem:[%s222 + $0x180] sm:$0xff]
        %v357 = vld [vmem:[%s222 + $0x188] sm:$0xff]
        %v358 = vld [vmem:[%s222 + $0x190] sm:$0xff]
        %v359 = vld [vmem:[%s222 + $0x198] sm:$0xff]
        %v360 = vld [vmem:[%s222 + $0x1a0] sm:$0xff]
        %v361 = vld [vmem:[%s222 + $0x1a8] sm:$0xff]
        %v362 = vld [vmem:[%s222 + $0x1b0] sm:$0xff]
        %v363 = vld [vmem:[%s222 + $0x1b8] sm:$0xff]
        %v364 = vld [vmem:[%s222 + $0x1c0] sm:$0xff]
        %v365 = vld [vmem:[%s222 + $0x1c8] sm:$0xff]
        %v366 = vld [vmem:[%s222 + $0x1d0] sm:$0xff]
        %v367 = vld [vmem:[%s222 + $0x1d8] sm:$0xff]
        %v368 = vld [vmem:[%s222 + $0x1e0] sm:$0xff]
        %v369 = vld [vmem:[%s222 + $0x1e8] sm:$0xff]
        %v370 = vld [vmem:[%s222 + $0x1f0] sm:$0xff]
        %v371 = vld [vmem:[%s222 + $0x1f8] sm:$0xff]
        %v372 = vld [vmem:[%s222 + $0x200] sm:$0xff]
        %v373 = vld [vmem:[%s222 + $0x208] sm:$0xff]
        %v374 = vld [vmem:[%s222 + $0x210] sm:$0xff]
        %v375 = vld [vmem:[%s222 + $0x218] sm:$0xff]
        %v376 = vld [vmem:[%s222 + $0x220] sm:$0xff]
        %v377 = vld [vmem:[%s222 + $0x228] sm:$0xff]
        %v378 = vld [vmem:[%s222 + $0x230] sm:$0xff]
        %v379 = vld [vmem:[%s222 + $0x238] sm:$0xff]
        %v380 = vld [vmem:[%s222 + $0x240] sm:$0xff]
        %v381 = vld [vmem:[%s222 + $0x248] sm:$0xff]
        %v382 = vld [vmem:[%s222 + $0x250] sm:$0xff]
        %v383 = vld [vmem:[%s222 + $0x258] sm:$0xff]
        %v384 = vld [vmem:[%s222 + $0x260] sm:$0xff]
        %v385 = vld [vmem:[%s222 + $0x268] sm:$0xff]
        %v386 = vld [vmem:[%s222 + $0x270] sm:$0xff]
        %v387 = vld [vmem:[%s222 + $0x278] sm:$0xff]
        %v388 = vld [vmem:[%s222 + $0x280] sm:$0xff]
        %v389 = vld [vmem:[%s222 + $0x288] sm:$0xff]
        %v390 = vld [vmem:[%s222 + $0x290] sm:$0xff]
        %v391 = vld [vmem:[%s222 + $0x298] sm:$0xff]
        %v392 = vld [vmem:[%s222 + $0x2a0] sm:$0xff]
        %v393 = vld [vmem:[%s222 + $0x2a8] sm:$0xff]
        %v394 = vld [vmem:[%s222 + $0x2b0] sm:$0xff]
        %v395 = vld [vmem:[%s222 + $0x2b8] sm:$0xff]
        %v396 = vld [vmem:[%s222 + $0x2c0] sm:$0xff]
        %v397 = vld [vmem:[%s222 + $0x2c8] sm:$0xff]
        %v398 = vld [vmem:[%s222 + $0x2d0] sm:$0xff]
        %v399 = vld [vmem:[%s222 + $0x2d8] sm:$0xff]
        %v400 = vld [vmem:[%s222 + $0x2e0] sm:$0xff]
        %v401 = vld [vmem:[%s222 + $0x2e8] sm:$0xff]
        %v402 = vld [vmem:[%s222 + $0x2f0] sm:$0xff]
        %v403 = vld [vmem:[%s222 + $0x2f8] sm:$0xff]
        %v404 = vld [vmem:[%s222 + $0x300] sm:$0xff]
        %v405 = vld [vmem:[%s222 + $0x308] sm:$0xff]
        %v406 = vld [vmem:[%s222 + $0x310] sm:$0xff]
        %v407 = vld [vmem:[%s222 + $0x318] sm:$0xff]
        %v408 = vld [vmem:[%s222 + $0x320] sm:$0xff]
        %v409 = vld [vmem:[%s222 + $0x328] sm:$0xff]
        %v410 = vld [vmem:[%s222 + $0x330] sm:$0xff]
        %v411 = vld [vmem:[%s222 + $0x338] sm:$0xff]
        %v412 = vld [vmem:[%s222 + $0x340] sm:$0xff]
        %v413 = vld [vmem:[%s222 + $0x348] sm:$0xff]
        %v414 = vld [vmem:[%s222 + $0x350] sm:$0xff]
        %v415 = vld [vmem:[%s222 + $0x358] sm:$0xff]
        %v416 = vld [vmem:[%s222 + $0x360] sm:$0xff]
        %v417 = vld [vmem:[%s222 + $0x368] sm:$0xff]
        %v418 = vld [vmem:[%s222 + $0x370] sm:$0xff]
        %v419 = vld [vmem:[%s222 + $0x378] sm:$0xff]
        %v420 = vld [vmem:[%s222 + $0x380] sm:$0xff]
        %v421 = vld [vmem:[%s222 + $0x388] sm:$0xff]
        %v422 = vld [vmem:[%s222 + $0x390] sm:$0xff]
        %v423 = vld [vmem:[%s222 + $0x398] sm:$0xff]
        %v424 = vld [vmem:[%s222 + $0x3a0] sm:$0xff]
        %v425 = vld [vmem:[%s222 + $0x3a8] sm:$0xff]
        %v426 = vld [vmem:[%s222 + $0x3b0] sm:$0xff]
        %v427 = vld [vmem:[%s222 + $0x3b8] sm:$0xff]
        %v428 = vld [vmem:[%s222 + $0x3c0] sm:$0xff]
        %v429 = vld [vmem:[%s222 + $0x3c8] sm:$0xff]
        %v430 = vld [vmem:[%s222 + $0x3d0] sm:$0xff]
        %v431 = vld [vmem:[%s222 + $0x3d8] sm:$0xff]
        %v432 = vld [vmem:[%s222 + $0x3e0] sm:$0xff]
        %v433 = vld [vmem:[%s222 + $0x3e8] sm:$0xff]
        %v434 = vld [vmem:[%s222 + $0x3f0] sm:$0xff]
        %v435 = vld [vmem:[%s222 + $0x3f8] sm:$0xff]
        %v564 = vunpack.c.l.b16 %v308
        %v565 = vunpack.c.h.b16 %v308
        %v566 = vunpack.c.l.b16 %v309
        %v567 = vunpack.c.h.b16 %v309
        %v568 = vunpack.c.l.b16 %v310
        %v569 = vunpack.c.h.b16 %v310
        %v570 = vunpack.c.l.b16 %v311
        %v571 = vunpack.c.h.b16 %v311
        %v572 = vunpack.c.l.b16 %v312
        %v573 = vunpack.c.h.b16 %v312
        %v574 = vunpack.c.l.b16 %v313
        %v575 = vunpack.c.h.b16 %v313
        %v576 = vunpack.c.l.b16 %v314
        %v577 = vunpack.c.h.b16 %v314
        %v578 = vunpack.c.l.b16 %v315
        %v579 = vunpack.c.h.b16 %v315
        %v580 = vunpack.c.l.b16 %v316
        %v581 = vunpack.c.h.b16 %v316
        %v582 = vunpack.c.l.b16 %v317
        %v583 = vunpack.c.h.b16 %v317
        %v584 = vunpack.c.l.b16 %v318
        %v585 = vunpack.c.h.b16 %v318
        %v586 = vunpack.c.l.b16 %v319
        %v587 = vunpack.c.h.b16 %v319
        %v588 = vunpack.c.l.b16 %v320
        %v589 = vunpack.c.h.b16 %v320
        %v590 = vunpack.c.l.b16 %v321
        %v591 = vunpack.c.h.b16 %v321
        %v592 = vunpack.c.l.b16 %v322
        %v593 = vunpack.c.h.b16 %v322
        %v594 = vunpack.c.l.b16 %v323
        %v595 = vunpack.c.h.b16 %v323
        %v596 = vunpack.c.l.b16 %v324
        %v597 = vunpack.c.h.b16 %v324
        %v598 = vunpack.c.l.b16 %v325
        %v599 = vunpack.c.h.b16 %v325
        %v600 = vunpack.c.l.b16 %v326
        %v601 = vunpack.c.h.b16 %v326
        %v602 = vunpack.c.l.b16 %v327
        %v603 = vunpack.c.h.b16 %v327
        %v604 = vunpack.c.l.b16 %v328
        %v605 = vunpack.c.h.b16 %v328
        %v606 = vunpack.c.l.b16 %v329
        %v607 = vunpack.c.h.b16 %v329
        %v608 = vunpack.c.l.b16 %v330
        %v609 = vunpack.c.h.b16 %v330
        %v610 = vunpack.c.l.b16 %v331
        %v611 = vunpack.c.h.b16 %v331
        %v612 = vunpack.c.l.b16 %v332
        %v613 = vunpack.c.h.b16 %v332
        %v614 = vunpack.c.l.b16 %v333
        %v615 = vunpack.c.h.b16 %v333
        %v616 = vunpack.c.l.b16 %v334
        %v617 = vunpack.c.h.b16 %v334
        %v618 = vunpack.c.l.b16 %v335
        %v619 = vunpack.c.h.b16 %v335
        %v620 = vunpack.c.l.b16 %v336
        %v621 = vunpack.c.h.b16 %v336
        %v622 = vunpack.c.l.b16 %v337
        %v623 = vunpack.c.h.b16 %v337
        %v624 = vunpack.c.l.b16 %v338
        %v625 = vunpack.c.h.b16 %v338
        %v626 = vunpack.c.l.b16 %v339
        %v627 = vunpack.c.h.b16 %v339
        %v628 = vunpack.c.l.b16 %v340
        %v629 = vunpack.c.h.b16 %v340
        %v630 = vunpack.c.l.b16 %v341
        %v631 = vunpack.c.h.b16 %v341
        %v632 = vunpack.c.l.b16 %v342
        %v633 = vunpack.c.h.b16 %v342
        %v634 = vunpack.c.l.b16 %v343
        %v635 = vunpack.c.h.b16 %v343
        %v636 = vunpack.c.l.b16 %v344
        %v637 = vunpack.c.h.b16 %v344
        %v638 = vunpack.c.l.b16 %v345
        %v639 = vunpack.c.h.b16 %v345
        %v640 = vunpack.c.l.b16 %v346
        %v641 = vunpack.c.h.b16 %v346
        %v642 = vunpack.c.l.b16 %v347
        %v643 = vunpack.c.h.b16 %v347
        %v644 = vunpack.c.l.b16 %v348
        %v645 = vunpack.c.h.b16 %v348
        %v646 = vunpack.c.l.b16 %v349
        %v647 = vunpack.c.h.b16 %v349
        %v648 = vunpack.c.l.b16 %v350
        %v649 = vunpack.c.h.b16 %v350
        %v650 = vunpack.c.l.b16 %v351
        %v651 = vunpack.c.h.b16 %v351
        %v652 = vunpack.c.l.b16 %v352
        %v653 = vunpack.c.h.b16 %v352
        %v654 = vunpack.c.l.b16 %v353
        %v655 = vunpack.c.h.b16 %v353
        %v656 = vunpack.c.l.b16 %v354
        %v657 = vunpack.c.h.b16 %v354
        %v658 = vunpack.c.l.b16 %v355
        %v659 = vunpack.c.h.b16 %v355
        %v660 = vunpack.c.l.b16 %v356
        %v661 = vunpack.c.h.b16 %v356
        %v662 = vunpack.c.l.b16 %v357
        %v663 = vunpack.c.h.b16 %v357
        %v664 = vunpack.c.l.b16 %v358
        %v665 = vunpack.c.h.b16 %v358
        %v666 = vunpack.c.l.b16 %v359
        %v667 = vunpack.c.h.b16 %v359
        %v668 = vunpack.c.l.b16 %v360
        %v669 = vunpack.c.h.b16 %v360
        %v670 = vunpack.c.l.b16 %v361
        %v671 = vunpack.c.h.b16 %v361
        %v672 = vunpack.c.l.b16 %v362
        %v673 = vunpack.c.h.b16 %v362
        %v674 = vunpack.c.l.b16 %v363
        %v675 = vunpack.c.h.b16 %v363
        %v676 = vunpack.c.l.b16 %v364
        %v677 = vunpack.c.h.b16 %v364
        %v678 = vunpack.c.l.b16 %v365
        %v679 = vunpack.c.h.b16 %v365
        %v680 = vunpack.c.l.b16 %v366
        %v681 = vunpack.c.h.b16 %v366
        %v682 = vunpack.c.l.b16 %v367
        %v683 = vunpack.c.h.b16 %v367
        %v684 = vunpack.c.l.b16 %v368
        %v685 = vunpack.c.h.b16 %v368
        %v686 = vunpack.c.l.b16 %v369
        %v687 = vunpack.c.h.b16 %v369
        %v688 = vunpack.c.l.b16 %v370
        %v689 = vunpack.c.h.b16 %v370
        %v690 = vunpack.c.l.b16 %v371
        %v691 = vunpack.c.h.b16 %v371
        %v692 = vunpack.c.l.b16 %v372
        %v693 = vunpack.c.h.b16 %v372
        %v694 = vunpack.c.l.b16 %v373
        %v695 = vunpack.c.h.b16 %v373
        %v696 = vunpack.c.l.b16 %v374
        %v697 = vunpack.c.h.b16 %v374
        %v698 = vunpack.c.l.b16 %v375
        %v699 = vunpack.c.h.b16 %v375
        %v700 = vunpack.c.l.b16 %v376
        %v701 = vunpack.c.h.b16 %v376
        %v702 = vunpack.c.l.b16 %v377
        %v703 = vunpack.c.h.b16 %v377
        %v704 = vunpack.c.l.b16 %v378
        %v705 = vunpack.c.h.b16 %v378
        %v706 = vunpack.c.l.b16 %v379
        %v707 = vunpack.c.h.b16 %v379
        %v708 = vunpack.c.l.b16 %v380
        %v709 = vunpack.c.h.b16 %v380
        %v710 = vunpack.c.l.b16 %v381
        %v711 = vunpack.c.h.b16 %v381
        %v712 = vunpack.c.l.b16 %v382
        %v713 = vunpack.c.h.b16 %v382
        %v714 = vunpack.c.l.b16 %v383
        %v715 = vunpack.c.h.b16 %v383
        %v716 = vunpack.c.l.b16 %v384
        %v717 = vunpack.c.h.b16 %v384
        %v718 = vunpack.c.l.b16 %v385
        %v719 = vunpack.c.h.b16 %v385
        %v720 = vunpack.c.l.b16 %v386
        %v721 = vunpack.c.h.b16 %v386
        %v722 = vunpack.c.l.b16 %v387
        %v723 = vunpack.c.h.b16 %v387
        %v724 = vunpack.c.l.b16 %v388
        %v725 = vunpack.c.h.b16 %v388
        %v726 = vunpack.c.l.b16 %v389
        %v727 = vunpack.c.h.b16 %v389
        %v728 = vunpack.c.l.b16 %v390
        %v729 = vunpack.c.h.b16 %v390
        %v730 = vunpack.c.l.b16 %v391
        %v731 = vunpack.c.h.b16 %v391
        %v732 = vunpack.c.l.b16 %v392
        %v733 = vunpack.c.h.b16 %v392
        %v734 = vunpack.c.l.b16 %v393
        %v735 = vunpack.c.h.b16 %v393
        %v736 = vunpack.c.l.b16 %v394
        %v737 = vunpack.c.h.b16 %v394
        %v738 = vunpack.c.l.b16 %v395
        %v739 = vunpack.c.h.b16 %v395
        %v740 = vunpack.c.l.b16 %v396
        %v741 = vunpack.c.h.b16 %v396
        %v742 = vunpack.c.l.b16 %v397
        %v743 = vunpack.c.h.b16 %v397
        %v744 = vunpack.c.l.b16 %v398
        %v745 = vunpack.c.h.b16 %v398
        %v746 = vunpack.c.l.b16 %v399
        %v747 = vunpack.c.h.b16 %v399
        %v748 = vunpack.c.l.b16 %v400
        %v749 = vunpack.c.h.b16 %v400
        %v750 = vunpack.c.l.b16 %v401
        %v751 = vunpack.c.h.b16 %v401
        %v752 = vunpack.c.l.b16 %v402
        %v753 = vunpack.c.h.b16 %v402
        %v754 = vunpack.c.l.b16 %v403
        %v755 = vunpack.c.h.b16 %v403
        %v756 = vunpack.c.l.b16 %v404
        %v757 = vunpack.c.h.b16 %v404
        %v758 = vunpack.c.l.b16 %v405
        %v759 = vunpack.c.h.b16 %v405
        %v760 = vunpack.c.l.b16 %v406
        %v761 = vunpack.c.h.b16 %v406
        %v762 = vunpack.c.l.b16 %v407
        %v763 = vunpack.c.h.b16 %v407
        %v764 = vunpack.c.l.b16 %v408
        %v765 = vunpack.c.h.b16 %v408
        %v766 = vunpack.c.l.b16 %v409
        %v767 = vunpack.c.h.b16 %v409
        %v768 = vunpack.c.l.b16 %v410
        %v769 = vunpack.c.h.b16 %v410
        %v770 = vunpack.c.l.b16 %v411
        %v771 = vunpack.c.h.b16 %v411
        %v772 = vunpack.c.l.b16 %v412
        %v773 = vunpack.c.h.b16 %v412
        %v774 = vunpack.c.l.b16 %v413
        %v775 = vunpack.c.h.b16 %v413
        %v776 = vunpack.c.l.b16 %v414
        %v777 = vunpack.c.h.b16 %v414
        %v778 = vunpack.c.l.b16 %v415
        %v779 = vunpack.c.h.b16 %v415
        %v780 = vunpack.c.l.b16 %v416
        %v781 = vunpack.c.h.b16 %v416
        %v782 = vunpack.c.l.b16 %v417
        %v783 = vunpack.c.h.b16 %v417
        %v784 = vunpack.c.l.b16 %v418
        %v785 = vunpack.c.h.b16 %v418
        %v786 = vunpack.c.l.b16 %v419
        %v787 = vunpack.c.h.b16 %v419
        %v788 = vunpack.c.l.b16 %v420
        %v789 = vunpack.c.h.b16 %v420
        %v790 = vunpack.c.l.b16 %v421
        %v791 = vunpack.c.h.b16 %v421
        %v792 = vunpack.c.l.b16 %v422
        %v793 = vunpack.c.h.b16 %v422
        %v794 = vunpack.c.l.b16 %v423
        %v795 = vunpack.c.h.b16 %v423
        %v796 = vunpack.c.l.b16 %v424
        %v797 = vunpack.c.h.b16 %v424
        %v798 = vunpack.c.l.b16 %v425
        %v799 = vunpack.c.h.b16 %v425
        %v800 = vunpack.c.l.b16 %v426
        %v801 = vunpack.c.h.b16 %v426
        %v802 = vunpack.c.l.b16 %v427
        %v803 = vunpack.c.h.b16 %v427
        %v804 = vunpack.c.l.b16 %v428
        %v805 = vunpack.c.h.b16 %v428
        %v806 = vunpack.c.l.b16 %v429
        %v807 = vunpack.c.h.b16 %v429
        %v808 = vunpack.c.l.b16 %v430
        %v809 = vunpack.c.h.b16 %v430
        %v810 = vunpack.c.l.b16 %v431
        %v811 = vunpack.c.h.b16 %v431
        %v812 = vunpack.c.l.b16 %v432
        %v813 = vunpack.c.h.b16 %v432
        %v814 = vunpack.c.l.b16 %v433
        %v815 = vunpack.c.h.b16 %v433
        %v816 = vunpack.c.l.b16 %v434
        %v817 = vunpack.c.h.b16 %v434
        %v818 = vunpack.c.l.b16 %v435
        %v819 = vunpack.c.h.b16 %v435
        %v820 = vpack.c.b16 %v568, %v564
        %v821 = vpack.c.b16 %v569, %v565
        %v822 = vpack.c.b16 %v570, %v566
        %v823 = vpack.c.b16 %v571, %v567
        %v824 = vpack.c.b16 %v576, %v572
        %v825 = vpack.c.b16 %v577, %v573
        %v826 = vpack.c.b16 %v578, %v574
        %v827 = vpack.c.b16 %v579, %v575
        %v828 = vpack.c.b16 %v584, %v580
        %v829 = vpack.c.b16 %v585, %v581
        %v830 = vpack.c.b16 %v586, %v582
        %v831 = vpack.c.b16 %v587, %v583
        %v832 = vpack.c.b16 %v592, %v588
        %v833 = vpack.c.b16 %v593, %v589
        %v834 = vpack.c.b16 %v594, %v590
        %v835 = vpack.c.b16 %v595, %v591
        %v836 = vpack.c.b16 %v600, %v596
        %v837 = vpack.c.b16 %v601, %v597
        %v838 = vpack.c.b16 %v602, %v598
        %v839 = vpack.c.b16 %v603, %v599
        %v840 = vpack.c.b16 %v608, %v604
        %v841 = vpack.c.b16 %v609, %v605
        %v842 = vpack.c.b16 %v610, %v606
        %v843 = vpack.c.b16 %v611, %v607
        %v844 = vpack.c.b16 %v616, %v612
        %v845 = vpack.c.b16 %v617, %v613
        %v846 = vpack.c.b16 %v618, %v614
        %v847 = vpack.c.b16 %v619, %v615
        %v848 = vpack.c.b16 %v624, %v620
        %v849 = vpack.c.b16 %v625, %v621
        %v850 = vpack.c.b16 %v626, %v622
        %v851 = vpack.c.b16 %v627, %v623
        %v852 = vpack.c.b16 %v632, %v628
        %v853 = vpack.c.b16 %v633, %v629
        %v854 = vpack.c.b16 %v634, %v630
        %v855 = vpack.c.b16 %v635, %v631
        %v856 = vpack.c.b16 %v640, %v636
        %v857 = vpack.c.b16 %v641, %v637
        %v858 = vpack.c.b16 %v642, %v638
        %v859 = vpack.c.b16 %v643, %v639
        %v860 = vpack.c.b16 %v648, %v644
        %v861 = vpack.c.b16 %v649, %v645
        %v862 = vpack.c.b16 %v650, %v646
        %v863 = vpack.c.b16 %v651, %v647
        %v864 = vpack.c.b16 %v656, %v652
        %v865 = vpack.c.b16 %v657, %v653
        %v866 = vpack.c.b16 %v658, %v654
        %v867 = vpack.c.b16 %v659, %v655
        %v868 = vpack.c.b16 %v664, %v660
        %v869 = vpack.c.b16 %v665, %v661
        %v870 = vpack.c.b16 %v666, %v662
        %v871 = vpack.c.b16 %v667, %v663
        %v872 = vpack.c.b16 %v672, %v668
        %v873 = vpack.c.b16 %v673, %v669
        %v874 = vpack.c.b16 %v674, %v670
        %v875 = vpack.c.b16 %v675, %v671
        %v876 = vpack.c.b16 %v680, %v676
        %v877 = vpack.c.b16 %v681, %v677
        %v878 = vpack.c.b16 %v682, %v678
        %v879 = vpack.c.b16 %v683, %v679
        %v880 = vpack.c.b16 %v688, %v684
        %v881 = vpack.c.b16 %v689, %v685
        %v882 = vpack.c.b16 %v690, %v686
        %v883 = vpack.c.b16 %v691, %v687
        %v884 = vpack.c.b16 %v696, %v692
        %v885 = vpack.c.b16 %v697, %v693
        %v886 = vpack.c.b16 %v698, %v694
        %v887 = vpack.c.b16 %v699, %v695
        %v888 = vpack.c.b16 %v704, %v700
        %v889 = vpack.c.b16 %v705, %v701
        %v890 = vpack.c.b16 %v706, %v702
        %v891 = vpack.c.b16 %v707, %v703
        %v892 = vpack.c.b16 %v712, %v708
        %v893 = vpack.c.b16 %v713, %v709
        %v894 = vpack.c.b16 %v714, %v710
        %v895 = vpack.c.b16 %v715, %v711
        %v896 = vpack.c.b16 %v720, %v716
        %v897 = vpack.c.b16 %v721, %v717
        %v898 = vpack.c.b16 %v722, %v718
        %v899 = vpack.c.b16 %v723, %v719
        %v900 = vpack.c.b16 %v728, %v724
        %v901 = vpack.c.b16 %v729, %v725
        %v902 = vpack.c.b16 %v730, %v726
        %v903 = vpack.c.b16 %v731, %v727
        %v904 = vpack.c.b16 %v736, %v732
        %v905 = vpack.c.b16 %v737, %v733
        %v906 = vpack.c.b16 %v738, %v734
        %v907 = vpack.c.b16 %v739, %v735
        %v908 = vpack.c.b16 %v744, %v740
        %v909 = vpack.c.b16 %v745, %v741
        %v910 = vpack.c.b16 %v746, %v742
        %v911 = vpack.c.b16 %v747, %v743
        %v912 = vpack.c.b16 %v752, %v748
        %v913 = vpack.c.b16 %v753, %v749
        %v914 = vpack.c.b16 %v754, %v750
        %v915 = vpack.c.b16 %v755, %v751
        %v916 = vpack.c.b16 %v760, %v756
        %v917 = vpack.c.b16 %v761, %v757
        %v918 = vpack.c.b16 %v762, %v758
        %v919 = vpack.c.b16 %v763, %v759
        %v920 = vpack.c.b16 %v768, %v764
        %v921 = vpack.c.b16 %v769, %v765
        %v922 = vpack.c.b16 %v770, %v766
        %v923 = vpack.c.b16 %v771, %v767
        %v924 = vpack.c.b16 %v776, %v772
        %v925 = vpack.c.b16 %v777, %v773
        %v926 = vpack.c.b16 %v778, %v774
        %v927 = vpack.c.b16 %v779, %v775
        %v928 = vpack.c.b16 %v784, %v780
        %v929 = vpack.c.b16 %v785, %v781
        %v930 = vpack.c.b16 %v786, %v782
        %v931 = vpack.c.b16 %v787, %v783
        %v932 = vpack.c.b16 %v792, %v788
        %v933 = vpack.c.b16 %v793, %v789
        %v934 = vpack.c.b16 %v794, %v790
        %v935 = vpack.c.b16 %v795, %v791
        %v936 = vpack.c.b16 %v800, %v796
        %v937 = vpack.c.b16 %v801, %v797
        %v938 = vpack.c.b16 %v802, %v798
        %v939 = vpack.c.b16 %v803, %v799
        %v940 = vpack.c.b16 %v808, %v804
        %v941 = vpack.c.b16 %v809, %v805
        %v942 = vpack.c.b16 %v810, %v806
        %v943 = vpack.c.b16 %v811, %v807
        %v944 = vpack.c.b16 %v816, %v812
        %v945 = vpack.c.b16 %v817, %v813
        %v946 = vpack.c.b16 %v818, %v814
        %v947 = vpack.c.b16 %v819, %v815
        %1076 = vmatpush.bf16.msra.mxu0 %v848
        %1077 = vmatpush.bf16.msra.mxu0 %v844
        %1078 = vmatpush.bf16.msra.mxu0 %v840
        %1079 = vmatpush.bf16.msra.mxu0 %v836
        %1080 = vmatpush.bf16.msra.mxu0 %v832
        %1081 = vmatpush.bf16.msra.mxu0 %v828
        %1082 = vmatpush.bf16.msra.mxu0 %v824
        %1083 = vmatpush.bf16.msra.mxu0 %v820
        %1084 = vmatmul.bf16.gmra.mxu0 %v304
        %v1085 = vpop.f32.mrf.mxu0
        %v1086 = vadd.f32 0.0, %v1085
        %v1087 = vpop.f32.mrf.mxu0
        %1088 = vdwg.mxu0
        %1089 = vmatpush.bf16.msra.mxu0 %v880
        %1090 = vmatpush.bf16.msra.mxu0 %v876
        %1091 = vmatpush.bf16.msra.mxu0 %v872
        %1092 = vmatpush.bf16.msra.mxu0 %v868
        %1093 = vmatpush.bf16.msra.mxu0 %v864
        %1094 = vmatpush.bf16.msra.mxu0 %v860
        %1095 = vmatpush.bf16.msra.mxu0 %v856
        %1096 = vmatpush.bf16.msra.mxu0 %v852
        %1097 = vmatmul.bf16.gmra.mxu0 %v305
        %v1098 = vpop.f32.mrf.mxu0
        %v1099 = vadd.f32 %v1086, %v1098
        %v1100 = vpop.f32.mrf.mxu0
        %1101 = vdwg.mxu0
        %1102 = vmatpush.bf16.msra.mxu0 %v912
        %1103 = vmatpush.bf16.msra.mxu0 %v908
        %1104 = vmatpush.bf16.msra.mxu0 %v904
        %1105 = vmatpush.bf16.msra.mxu0 %v900
        %1106 = vmatpush.bf16.msra.mxu0 %v896
        %1107 = vmatpush.bf16.msra.mxu0 %v892
        %1108 = vmatpush.bf16.msra.mxu0 %v888
        %1109 = vmatpush.bf16.msra.mxu0 %v884
        %1110 = vmatmul.bf16.gmra.mxu0 %v306
        %v1111 = vpop.f32.mrf.mxu0
        %v1112 = vadd.f32 %v1099, %v1111
        %v1113 = vpop.f32.mrf.mxu0
        %1114 = vdwg.mxu0
        %1115 = vmatpush.bf16.msra.mxu0 %v944
        %1116 = vmatpush.bf16.msra.mxu0 %v940
        %1117 = vmatpush.bf16.msra.mxu0 %v936
        %1118 = vmatpush.bf16.msra.mxu0 %v932
        %1119 = vmatpush.bf16.msra.mxu0 %v928
        %1120 = vmatpush.bf16.msra.mxu0 %v924
        %1121 = vmatpush.bf16.msra.mxu0 %v920
        %1122 = vmatpush.bf16.msra.mxu0 %v916
        %1123 = vmatmul.bf16.gmra.mxu0 %v307
        %v1124 = vpop.f32.mrf.mxu0
        %v1125 = vadd.f32 %v1112, %v1124
        %v1126 = vpop.f32.mrf.mxu0
        %1127 = vdwg.mxu0
        %1128 = vmatpush.bf16.msra.mxu0 %v849
        %1129 = vmatpush.bf16.msra.mxu0 %v845
        %1130 = vmatpush.bf16.msra.mxu0 %v841
        %1131 = vmatpush.bf16.msra.mxu0 %v837
        %1132 = vmatpush.bf16.msra.mxu0 %v833
        %1133 = vmatpush.bf16.msra.mxu0 %v829
        %1134 = vmatpush.bf16.msra.mxu0 %v825
        %1135 = vmatpush.bf16.msra.mxu0 %v821
        %1136 = vmatmul.bf16.gmra.mxu0 %v304
        %v1137 = vpop.f32.mrf.mxu0
        %v1138 = vadd.f32 0.0, %v1137
        %v1139 = vpop.f32.mrf.mxu0
        %1140 = vdwg.mxu0
        %1141 = vmatpush.bf16.msra.mxu0 %v881
        %1142 = vmatpush.bf16.msra.mxu0 %v877
        %1143 = vmatpush.bf16.msra.mxu0 %v873
        %1144 = vmatpush.bf16.msra.mxu0 %v869
        %1145 = vmatpush.bf16.msra.mxu0 %v865
        %1146 = vmatpush.bf16.msra.mxu0 %v861
        %1147 = vmatpush.bf16.msra.mxu0 %v857
        %1148 = vmatpush.bf16.msra.mxu0 %v853
        %1149 = vmatmul.bf16.gmra.mxu0 %v305
        %v1150 = vpop.f32.mrf.mxu0
        %v1151 = vadd.f32 %v1138, %v1150
        %v1152 = vpop.f32.mrf.mxu0
        %1153 = vdwg.mxu0
        %1154 = vmatpush.bf16.msra.mxu0 %v913
        %1155 = vmatpush.bf16.msra.mxu0 %v909
        %1156 = vmatpush.bf16.msra.mxu0 %v905
        %1157 = vmatpush.bf16.msra.mxu0 %v901
        %1158 = vmatpush.bf16.msra.mxu0 %v897
        %1159 = vmatpush.bf16.msra.mxu0 %v893
        %1160 = vmatpush.bf16.msra.mxu0 %v889
        %1161 = vmatpush.bf16.msra.mxu0 %v885
        %1162 = vmatmul.bf16.gmra.mxu0 %v306
        %v1163 = vpop.f32.mrf.mxu0
        %v1164 = vadd.f32 %v1151, %v1163
        %v1165 = vpop.f32.mrf.mxu0
        %1166 = vdwg.mxu0
        %1167 = vmatpush.bf16.msra.mxu0 %v945
        %1168 = vmatpush.bf16.msra.mxu0 %v941
        %1169 = vmatpush.bf16.msra.mxu0 %v937
        %1170 = vmatpush.bf16.msra.mxu0 %v933
        %1171 = vmatpush.bf16.msra.mxu0 %v929
        %1172 = vmatpush.bf16.msra.mxu0 %v925
        %1173 = vmatpush.bf16.msra.mxu0 %v921
        %1174 = vmatpush.bf16.msra.mxu0 %v917
        %1175 = vmatmul.bf16.gmra.mxu0 %v307
        %v1176 = vpop.f32.mrf.mxu0
        %v1177 = vadd.f32 %v1164, %v1176
        %v1178 = vpop.f32.mrf.mxu0
        %1179 = vdwg.mxu0
        %1180 = vmatpush.bf16.msra.mxu0 %v850
        %1181 = vmatpush.bf16.msra.mxu0 %v846
        %1182 = vmatpush.bf16.msra.mxu0 %v842
        %1183 = vmatpush.bf16.msra.mxu0 %v838
        %1184 = vmatpush.bf16.msra.mxu0 %v834
        %1185 = vmatpush.bf16.msra.mxu0 %v830
        %1186 = vmatpush.bf16.msra.mxu0 %v826
        %1187 = vmatpush.bf16.msra.mxu0 %v822
        %1188 = vmatmul.bf16.gmra.mxu0 %v304
        %v1189 = vpop.f32.mrf.mxu0
        %v1190 = vadd.f32 0.0, %v1189
        %v1191 = vpop.f32.mrf.mxu0
        %1192 = vdwg.mxu0
        %1193 = vmatpush.bf16.msra.mxu0 %v882
        %1194 = vmatpush.bf16.msra.mxu0 %v878
        %1195 = vmatpush.bf16.msra.mxu0 %v874
        %1196 = vmatpush.bf16.msra.mxu0 %v870
        %1197 = vmatpush.bf16.msra.mxu0 %v866
        %1198 = vmatpush.bf16.msra.mxu0 %v862
        %1199 = vmatpush.bf16.msra.mxu0 %v858
        %1200 = vmatpush.bf16.msra.mxu0 %v854
        %1201 = vmatmul.bf16.gmra.mxu0 %v305
        %v1202 = vpop.f32.mrf.mxu0
        %v1203 = vadd.f32 %v1190, %v1202
        %v1204 = vpop.f32.mrf.mxu0
        %1205 = vdwg.mxu0
        %1206 = vmatpush.bf16.msra.mxu0 %v914
        %1207 = vmatpush.bf16.msra.mxu0 %v910
        %1208 = vmatpush.bf16.msra.mxu0 %v906
        %1209 = vmatpush.bf16.msra.mxu0 %v902
        %1210 = vmatpush.bf16.msra.mxu0 %v898
        %1211 = vmatpush.bf16.msra.mxu0 %v894
        %1212 = vmatpush.bf16.msra.mxu0 %v890
        %1213 = vmatpush.bf16.msra.mxu0 %v886
        %1214 = vmatmul.bf16.gmra.mxu0 %v306
        %v1215 = vpop.f32.mrf.mxu0
        %v1216 = vadd.f32 %v1203, %v1215
        %v1217 = vpop.f32.mrf.mxu0
        %1218 = vdwg.mxu0
        %1219 = vmatpush.bf16.msra.mxu0 %v946
        %1220 = vmatpush.bf16.msra.mxu0 %v942
        %1221 = vmatpush.bf16.msra.mxu0 %v938
        %1222 = vmatpush.bf16.msra.mxu0 %v934
        %1223 = vmatpush.bf16.msra.mxu0 %v930
        %1224 = vmatpush.bf16.msra.mxu0 %v926
        %1225 = vmatpush.bf16.msra.mxu0 %v922
        %1226 = vmatpush.bf16.msra.mxu0 %v918
        %1227 = vmatmul.bf16.gmra.mxu0 %v307
        %v1228 = vpop.f32.mrf.mxu0
        %v1229 = vadd.f32 %v1216, %v1228
        %v1230 = vpop.f32.mrf.mxu0
        %1231 = vdwg.mxu0
        %1232 = vmatpush.bf16.msra.mxu0 %v851
        %1233 = vmatpush.bf16.msra.mxu0 %v847
        %1234 = vmatpush.bf16.msra.mxu0 %v843
        %1235 = vmatpush.bf16.msra.mxu0 %v839
        %1236 = vmatpush.bf16.msra.mxu0 %v835
        %1237 = vmatpush.bf16.msra.mxu0 %v831
        %1238 = vmatpush.bf16.msra.mxu0 %v827
        %1239 = vmatpush.bf16.msra.mxu0 %v823
        %1240 = vmatmul.bf16.gmra.mxu0 %v304
        %v1241 = vpop.f32.mrf.mxu0
        %v1242 = vadd.f32 0.0, %v1241
        %v1243 = vpop.f32.mrf.mxu0
        %1244 = vdwg.mxu0
        %1245 = vmatpush.bf16.msra.mxu0 %v883
        %1246 = vmatpush.bf16.msra.mxu0 %v879
        %1247 = vmatpush.bf16.msra.mxu0 %v875
        %1248 = vmatpush.bf16.msra.mxu0 %v871
        %1249 = vmatpush.bf16.msra.mxu0 %v867
        %1250 = vmatpush.bf16.msra.mxu0 %v863
        %1251 = vmatpush.bf16.msra.mxu0 %v859
        %1252 = vmatpush.bf16.msra.mxu0 %v855
        %1253 = vmatmul.bf16.gmra.mxu0 %v305
        %v1254 = vpop.f32.mrf.mxu0
        %v1255 = vadd.f32 %v1242, %v1254
        %v1256 = vpop.f32.mrf.mxu0
        %1257 = vdwg.mxu0
        %1258 = vmatpush.bf16.msra.mxu0 %v915
        %1259 = vmatpush.bf16.msra.mxu0 %v911
        %1260 = vmatpush.bf16.msra.mxu0 %v907
        %1261 = vmatpush.bf16.msra.mxu0 %v903
        %1262 = vmatpush.bf16.msra.mxu0 %v899
        %1263 = vmatpush.bf16.msra.mxu0 %v895
        %1264 = vmatpush.bf16.msra.mxu0 %v891
        %1265 = vmatpush.bf16.msra.mxu0 %v887
        %1266 = vmatmul.bf16.gmra.mxu0 %v306
        %v1267 = vpop.f32.mrf.mxu0
        %v1268 = vadd.f32 %v1255, %v1267
        %v1269 = vpop.f32.mrf.mxu0
        %1270 = vdwg.mxu0
        %1271 = vmatpush.bf16.msra.mxu0 %v947
        %1272 = vmatpush.bf16.msra.mxu0 %v943
        %1273 = vmatpush.bf16.msra.mxu0 %v939
        %1274 = vmatpush.bf16.msra.mxu0 %v935
        %1275 = vmatpush.bf16.msra.mxu0 %v931
        %1276 = vmatpush.bf16.msra.mxu0 %v927
        %1277 = vmatpush.bf16.msra.mxu0 %v923
        %1278 = vmatpush.bf16.msra.mxu0 %v919
        %1279 = vmatmul.bf16.gmra.mxu0 %v307
        %v1280 = vpop.f32.mrf.mxu0
        %v1281 = vadd.f32 %v1268, %v1280
        %v1282 = vpop.f32.mrf.mxu0
        %1283 = vdwg.mxu0
        %v1284 = vadd.f32 %v296, %v1125
        %v1285 = vadd.f32 %v297, %v1177
        %v1286 = vadd.f32 %v298, %v1229
        %v1287 = vadd.f32 %v299, %v1281
        %1288 = vst [vmem:[#allocation2] sm:$0xff] %v1284
        %1289 = vst [vmem:[#allocation2 + $0x8] sm:$0xff] %v1285
        %1290 = vst [vmem:[#allocation2 + $0x10] sm:$0xff] %v1286
        %1291 = vst [vmem:[#allocation2 + $0x18] sm:$0xff] %v1287
        // Predicated region
        $region45: #{multi_level_classifier.1} parent=31 // pred_check
          %p1292 = pneg %p288
        $region46: #{multi_level_classifier.1} parent=31 // pred_check_branch
          %1294 = sbr.rel (%p1292) target = $region48
        $region47: #{multi_level_classifier.1} parent=31 // pred_region
          %v1295 = vld [vmem:[#allocation2] sm:$0xff]
          %v1296 = vld [vmem:[#allocation2 + $0x8] sm:$0xff]
          %v1297 = vld [vmem:[#allocation2 + $0x10] sm:$0xff]
          %v1298 = vld [vmem:[#allocation2 + $0x18] sm:$0xff]
          %v1299 = vpack.c.bf16 %v1295, %v1295
          %v1300 = vpack.c.bf16 %v1296, %v1296
          %v1301 = vpack.c.bf16 %v1297, %v1297
          %v1302 = vpack.c.bf16 %v1298, %v1298
          %v1303 = vld [vmem:[#allocation5] sm:$0xff]
          %v1304 = vld [vmem:[#allocation5 + $0x8] sm:$0xff]
          %v1305 = vld [vmem:[#allocation5 + $0x10] sm:$0xff]
          %v1306 = vld [vmem:[#allocation5 + $0x18] sm:$0xff]
          %v1307 = vld [vmem:[#allocation5 + $0x20] sm:$0xff]
          %v1308 = vld [vmem:[#allocation5 + $0x28] sm:$0xff]
          %v1309 = vld [vmem:[#allocation5 + $0x30] sm:$0xff]
          %v1310 = vld [vmem:[#allocation5 + $0x38] sm:$0xff]
          %v1311 = vld [vmem:[#allocation5 + $0x40] sm:$0xff]
          %v1312 = vld [vmem:[#allocation5 + $0x48] sm:$0xff]
          %v1313 = vld [vmem:[#allocation5 + $0x50] sm:$0xff]
          %v1314 = vld [vmem:[#allocation5 + $0x58] sm:$0xff]
          %v1315 = vld [vmem:[#allocation5 + $0x60] sm:$0xff]
          %v1316 = vld [vmem:[#allocation5 + $0x68] sm:$0xff]
          %v1317 = vld [vmem:[#allocation5 + $0x70] sm:$0xff]
          %v1318 = vld [vmem:[#allocation5 + $0x78] sm:$0xff]
          %v1319 = vld [vmem:[#allocation5 + $0x80] sm:$0xff]
          %v1320 = vld [vmem:[#allocation5 + $0x88] sm:$0xff]
          %v1321 = vld [vmem:[#allocation5 + $0x90] sm:$0xff]
          %v1322 = vld [vmem:[#allocation5 + $0x98] sm:$0xff]
          %v1323 = vld [vmem:[#allocation5 + $0xa0] sm:$0xff]
          %v1324 = vld [vmem:[#allocation5 + $0xa8] sm:$0xff]
          %v1325 = vld [vmem:[#allocation5 + $0xb0] sm:$0xff]
          %v1326 = vld [vmem:[#allocation5 + $0xb8] sm:$0xff]
          %v1327 = vld [vmem:[#allocation5 + $0xc0] sm:$0xff]
          %v1328 = vld [vmem:[#allocation5 + $0xc8] sm:$0xff]
          %v1329 = vld [vmem:[#allocation5 + $0xd0] sm:$0xff]
          %v1330 = vld [vmem:[#allocation5 + $0xd8] sm:$0xff]
          %v1331 = vld [vmem:[#allocation5 + $0xe0] sm:$0xff]
          %v1332 = vld [vmem:[#allocation5 + $0xe8] sm:$0xff]
          %v1333 = vld [vmem:[#allocation5 + $0xf0] sm:$0xff]
          %v1334 = vld [vmem:[#allocation5 + $0xf8] sm:$0xff]
          %v1335 = vld [vmem:[#allocation5 + $0x100] sm:$0xff]
          %v1336 = vld [vmem:[#allocation5 + $0x108] sm:$0xff]
          %v1337 = vld [vmem:[#allocation5 + $0x110] sm:$0xff]
          %v1338 = vld [vmem:[#allocation5 + $0x118] sm:$0xff]
          %v1339 = vld [vmem:[#allocation5 + $0x120] sm:$0xff]
          %v1340 = vld [vmem:[#allocation5 + $0x128] sm:$0xff]
          %v1341 = vld [vmem:[#allocation5 + $0x130] sm:$0xff]
          %v1342 = vld [vmem:[#allocation5 + $0x138] sm:$0xff]
          %v1343 = vld [vmem:[#allocation5 + $0x140] sm:$0xff]
          %v1344 = vld [vmem:[#allocation5 + $0x148] sm:$0xff]
          %v1345 = vld [vmem:[#allocation5 + $0x150] sm:$0xff]
          %v1346 = vld [vmem:[#allocation5 + $0x158] sm:$0xff]
          %v1347 = vld [vmem:[#allocation5 + $0x160] sm:$0xff]
          %v1348 = vld [vmem:[#allocation5 + $0x168] sm:$0xff]
          %v1349 = vld [vmem:[#allocation5 + $0x170] sm:$0xff]
          %v1350 = vld [vmem:[#allocation5 + $0x178] sm:$0xff]
          %v1351 = vld [vmem:[#allocation5 + $0x180] sm:$0xff]
          %v1352 = vld [vmem:[#allocation5 + $0x188] sm:$0xff]
          %v1353 = vld [vmem:[#allocation5 + $0x190] sm:$0xff]
          %v1354 = vld [vmem:[#allocation5 + $0x198] sm:$0xff]
          %v1355 = vld [vmem:[#allocation5 + $0x1a0] sm:$0xff]
          %v1356 = vld [vmem:[#allocation5 + $0x1a8] sm:$0xff]
          %v1357 = vld [vmem:[#allocation5 + $0x1b0] sm:$0xff]
          %v1358 = vld [vmem:[#allocation5 + $0x1b8] sm:$0xff]
          %v1359 = vld [vmem:[#allocation5 + $0x1c0] sm:$0xff]
          %v1360 = vld [vmem:[#allocation5 + $0x1c8] sm:$0xff]
          %v1361 = vld [vmem:[#allocation5 + $0x1d0] sm:$0xff]
          %v1362 = vld [vmem:[#allocation5 + $0x1d8] sm:$0xff]
          %v1363 = vld [vmem:[#allocation5 + $0x1e0] sm:$0xff]
          %v1364 = vld [vmem:[#allocation5 + $0x1e8] sm:$0xff]
          %v1365 = vld [vmem:[#allocation5 + $0x1f0] sm:$0xff]
          %v1366 = vld [vmem:[#allocation5 + $0x1f8] sm:$0xff]
          %v1431 = vunpack.c.l.b16 %v1303
          %v1432 = vunpack.c.h.b16 %v1303
          %v1433 = vunpack.c.l.b16 %v1304
          %v1434 = vunpack.c.h.b16 %v1304
          %v1435 = vunpack.c.l.b16 %v1305
          %v1436 = vunpack.c.h.b16 %v1305
          %v1437 = vunpack.c.l.b16 %v1306
          %v1438 = vunpack.c.h.b16 %v1306
          %v1439 = vunpack.c.l.b16 %v1307
          %v1440 = vunpack.c.h.b16 %v1307
          %v1441 = vunpack.c.l.b16 %v1308
          %v1442 = vunpack.c.h.b16 %v1308
          %v1443 = vunpack.c.l.b16 %v1309
          %v1444 = vunpack.c.h.b16 %v1309
          %v1445 = vunpack.c.l.b16 %v1310
          %v1446 = vunpack.c.h.b16 %v1310
          %v1447 = vunpack.c.l.b16 %v1311
          %v1448 = vunpack.c.h.b16 %v1311
          %v1449 = vunpack.c.l.b16 %v1312
          %v1450 = vunpack.c.h.b16 %v1312
          %v1451 = vunpack.c.l.b16 %v1313
          %v1452 = vunpack.c.h.b16 %v1313
          %v1453 = vunpack.c.l.b16 %v1314
          %v1454 = vunpack.c.h.b16 %v1314
          %v1455 = vunpack.c.l.b16 %v1315
          %v1456 = vunpack.c.h.b16 %v1315
          %v1457 = vunpack.c.l.b16 %v1316
          %v1458 = vunpack.c.h.b16 %v1316
          %v1459 = vunpack.c.l.b16 %v1317
          %v1460 = vunpack.c.h.b16 %v1317
          %v1461 = vunpack.c.l.b16 %v1318
          %v1462 = vunpack.c.h.b16 %v1318
          %v1463 = vunpack.c.l.b16 %v1319
          %v1464 = vunpack.c.h.b16 %v1319
          %v1465 = vunpack.c.l.b16 %v1320
          %v1466 = vunpack.c.h.b16 %v1320
          %v1467 = vunpack.c.l.b16 %v1321
          %v1468 = vunpack.c.h.b16 %v1321
          %v1469 = vunpack.c.l.b16 %v1322
          %v1470 = vunpack.c.h.b16 %v1322
          %v1471 = vunpack.c.l.b16 %v1323
          %v1472 = vunpack.c.h.b16 %v1323
          %v1473 = vunpack.c.l.b16 %v1324
          %v1474 = vunpack.c.h.b16 %v1324
          %v1475 = vunpack.c.l.b16 %v1325
          %v1476 = vunpack.c.h.b16 %v1325
          %v1477 = vunpack.c.l.b16 %v1326
          %v1478 = vunpack.c.h.b16 %v1326
          %v1479 = vunpack.c.l.b16 %v1327
          %v1480 = vunpack.c.h.b16 %v1327
          %v1481 = vunpack.c.l.b16 %v1328
          %v1482 = vunpack.c.h.b16 %v1328
          %v1483 = vunpack.c.l.b16 %v1329
          %v1484 = vunpack.c.h.b16 %v1329
          %v1485 = vunpack.c.l.b16 %v1330
          %v1486 = vunpack.c.h.b16 %v1330
          %v1487 = vunpack.c.l.b16 %v1331
          %v1488 = vunpack.c.h.b16 %v1331
          %v1489 = vunpack.c.l.b16 %v1332
          %v1490 = vunpack.c.h.b16 %v1332
          %v1491 = vunpack.c.l.b16 %v1333
          %v1492 = vunpack.c.h.b16 %v1333
          %v1493 = vunpack.c.l.b16 %v1334
          %v1494 = vunpack.c.h.b16 %v1334
          %v1495 = vunpack.c.l.b16 %v1335
          %v1496 = vunpack.c.h.b16 %v1335
          %v1497 = vunpack.c.l.b16 %v1336
          %v1498 = vunpack.c.h.b16 %v1336
          %v1499 = vunpack.c.l.b16 %v1337
          %v1500 = vunpack.c.h.b16 %v1337
          %v1501 = vunpack.c.l.b16 %v1338
          %v1502 = vunpack.c.h.b16 %v1338
          %v1503 = vunpack.c.l.b16 %v1339
          %v1504 = vunpack.c.h.b16 %v1339
          %v1505 = vunpack.c.l.b16 %v1340
          %v1506 = vunpack.c.h.b16 %v1340
          %v1507 = vunpack.c.l.b16 %v1341
          %v1508 = vunpack.c.h.b16 %v1341
          %v1509 = vunpack.c.l.b16 %v1342
          %v1510 = vunpack.c.h.b16 %v1342
          %v1511 = vunpack.c.l.b16 %v1343
          %v1512 = vunpack.c.h.b16 %v1343
          %v1513 = vunpack.c.l.b16 %v1344
          %v1514 = vunpack.c.h.b16 %v1344
          %v1515 = vunpack.c.l.b16 %v1345
          %v1516 = vunpack.c.h.b16 %v1345
          %v1517 = vunpack.c.l.b16 %v1346
          %v1518 = vunpack.c.h.b16 %v1346
          %v1519 = vunpack.c.l.b16 %v1347
          %v1520 = vunpack.c.h.b16 %v1347
          %v1521 = vunpack.c.l.b16 %v1348
          %v1522 = vunpack.c.h.b16 %v1348
          %v1523 = vunpack.c.l.b16 %v1349
          %v1524 = vunpack.c.h.b16 %v1349
          %v1525 = vunpack.c.l.b16 %v1350
          %v1526 = vunpack.c.h.b16 %v1350
          %v1527 = vunpack.c.l.b16 %v1351
          %v1528 = vunpack.c.h.b16 %v1351
          %v1529 = vunpack.c.l.b16 %v1352
          %v1530 = vunpack.c.h.b16 %v1352
          %v1531 = vunpack.c.l.b16 %v1353
          %v1532 = vunpack.c.h.b16 %v1353
          %v1533 = vunpack.c.l.b16 %v1354
          %v1534 = vunpack.c.h.b16 %v1354
          %v1535 = vunpack.c.l.b16 %v1355
          %v1536 = vunpack.c.h.b16 %v1355
          %v1537 = vunpack.c.l.b16 %v1356
          %v1538 = vunpack.c.h.b16 %v1356
          %v1539 = vunpack.c.l.b16 %v1357
          %v1540 = vunpack.c.h.b16 %v1357
          %v1541 = vunpack.c.l.b16 %v1358
          %v1542 = vunpack.c.h.b16 %v1358
          %v1543 = vunpack.c.l.b16 %v1359
          %v1544 = vunpack.c.h.b16 %v1359
          %v1545 = vunpack.c.l.b16 %v1360
          %v1546 = vunpack.c.h.b16 %v1360
          %v1547 = vunpack.c.l.b16 %v1361
          %v1548 = vunpack.c.h.b16 %v1361
          %v1549 = vunpack.c.l.b16 %v1362
          %v1550 = vunpack.c.h.b16 %v1362
          %v1551 = vunpack.c.l.b16 %v1363
          %v1552 = vunpack.c.h.b16 %v1363
          %v1553 = vunpack.c.l.b16 %v1364
          %v1554 = vunpack.c.h.b16 %v1364
          %v1555 = vunpack.c.l.b16 %v1365
          %v1556 = vunpack.c.h.b16 %v1365
          %v1557 = vunpack.c.l.b16 %v1366
          %v1558 = vunpack.c.h.b16 %v1366
          %v1559 = vpack.c.b16 %v1433, %v1431
          %v1560 = vpack.c.b16 %v1434, %v1432
          %v1561 = vpack.c.b16 %v1437, %v1435
          %v1562 = vpack.c.b16 %v1438, %v1436
          %v1563 = vpack.c.b16 %v1441, %v1439
          %v1564 = vpack.c.b16 %v1442, %v1440
          %v1565 = vpack.c.b16 %v1445, %v1443
          %v1566 = vpack.c.b16 %v1446, %v1444
          %v1567 = vpack.c.b16 %v1449, %v1447
          %v1568 = vpack.c.b16 %v1450, %v1448
          %v1569 = vpack.c.b16 %v1453, %v1451
          %v1570 = vpack.c.b16 %v1454, %v1452
          %v1571 = vpack.c.b16 %v1457, %v1455
          %v1572 = vpack.c.b16 %v1458, %v1456
          %v1573 = vpack.c.b16 %v1461, %v1459
          %v1574 = vpack.c.b16 %v1462, %v1460
          %v1575 = vpack.c.b16 %v1465, %v1463
          %v1576 = vpack.c.b16 %v1466, %v1464
          %v1577 = vpack.c.b16 %v1469, %v1467
          %v1578 = vpack.c.b16 %v1470, %v1468
          %v1579 = vpack.c.b16 %v1473, %v1471
          %v1580 = vpack.c.b16 %v1474, %v1472
          %v1581 = vpack.c.b16 %v1477, %v1475
          %v1582 = vpack.c.b16 %v1478, %v1476
          %v1583 = vpack.c.b16 %v1481, %v1479
          %v1584 = vpack.c.b16 %v1482, %v1480
          %v1585 = vpack.c.b16 %v1485, %v1483
          %v1586 = vpack.c.b16 %v1486, %v1484
          %v1587 = vpack.c.b16 %v1489, %v1487
          %v1588 = vpack.c.b16 %v1490, %v1488
          %v1589 = vpack.c.b16 %v1493, %v1491
          %v1590 = vpack.c.b16 %v1494, %v1492
          %v1591 = vpack.c.b16 %v1497, %v1495
          %v1592 = vpack.c.b16 %v1498, %v1496
          %v1593 = vpack.c.b16 %v1501, %v1499
          %v1594 = vpack.c.b16 %v1502, %v1500
          %v1595 = vpack.c.b16 %v1505, %v1503
          %v1596 = vpack.c.b16 %v1506, %v1504
          %v1597 = vpack.c.b16 %v1509, %v1507
          %v1598 = vpack.c.b16 %v1510, %v1508
          %v1599 = vpack.c.b16 %v1513, %v1511
          %v1600 = vpack.c.b16 %v1514, %v1512
          %v1601 = vpack.c.b16 %v1517, %v1515
          %v1602 = vpack.c.b16 %v1518, %v1516
          %v1603 = vpack.c.b16 %v1521, %v1519
          %v1604 = vpack.c.b16 %v1522, %v1520
          %v1605 = vpack.c.b16 %v1525, %v1523
          %v1606 = vpack.c.b16 %v1526, %v1524
          %v1607 = vpack.c.b16 %v1529, %v1527
          %v1608 = vpack.c.b16 %v1530, %v1528
          %v1609 = vpack.c.b16 %v1533, %v1531
          %v1610 = vpack.c.b16 %v1534, %v1532
          %v1611 = vpack.c.b16 %v1537, %v1535
          %v1612 = vpack.c.b16 %v1538, %v1536
          %v1613 = vpack.c.b16 %v1541, %v1539
          %v1614 = vpack.c.b16 %v1542, %v1540
          %v1615 = vpack.c.b16 %v1545, %v1543
          %v1616 = vpack.c.b16 %v1546, %v1544
          %v1617 = vpack.c.b16 %v1549, %v1547
          %v1618 = vpack.c.b16 %v1550, %v1548
          %v1619 = vpack.c.b16 %v1553, %v1551
          %v1620 = vpack.c.b16 %v1554, %v1552
          %v1621 = vpack.c.b16 %v1557, %v1555
          %v1622 = vpack.c.b16 %v1558, %v1556
          %1687 = vmatpush.bf16.msra.mxu0 %v1573
          %1688 = vmatpush.bf16.msra.mxu0 %v1571
          %1689 = vmatpush.bf16.msra.mxu0 %v1569
          %1690 = vmatpush.bf16.msra.mxu0 %v1567
          %1691 = vmatpush.bf16.msra.mxu0 %v1565
          %1692 = vmatpush.bf16.msra.mxu0 %v1563
          %1693 = vmatpush.bf16.msra.mxu0 %v1561
          %1694 = vmatpush.bf16.msra.mxu0 %v1559
          %1695 = vmatmul.bf16.gmra.mxu0 %v1299
          %v1696 = vpop.f32.mrf.mxu0
          %v1697 = vadd.f32 0.0, %v1696
          %v1698 = vpop.f32.mrf.mxu0
          %1699 = vdwg.mxu0
          %1700 = vmatpush.bf16.msra.mxu0 %v1589
          %1701 = vmatpush.bf16.msra.mxu0 %v1587
          %1702 = vmatpush.bf16.msra.mxu0 %v1585
          %1703 = vmatpush.bf16.msra.mxu0 %v1583
          %1704 = vmatpush.bf16.msra.mxu0 %v1581
          %1705 = vmatpush.bf16.msra.mxu0 %v1579
          %1706 = vmatpush.bf16.msra.mxu0 %v1577
          %1707 = vmatpush.bf16.msra.mxu0 %v1575
          %1708 = vmatmul.bf16.gmra.mxu0 %v1300
          %v1709 = vpop.f32.mrf.mxu0
          %v1710 = vadd.f32 %v1697, %v1709
          %v1711 = vpop.f32.mrf.mxu0
          %1712 = vdwg.mxu0
          %1713 = vmatpush.bf16.msra.mxu0 %v1605
          %1714 = vmatpush.bf16.msra.mxu0 %v1603
          %1715 = vmatpush.bf16.msra.mxu0 %v1601
          %1716 = vmatpush.bf16.msra.mxu0 %v1599
          %1717 = vmatpush.bf16.msra.mxu0 %v1597
          %1718 = vmatpush.bf16.msra.mxu0 %v1595
          %1719 = vmatpush.bf16.msra.mxu0 %v1593
          %1720 = vmatpush.bf16.msra.mxu0 %v1591
          %1721 = vmatmul.bf16.gmra.mxu0 %v1301
          %v1722 = vpop.f32.mrf.mxu0
          %v1723 = vadd.f32 %v1710, %v1722
          %v1724 = vpop.f32.mrf.mxu0
          %1725 = vdwg.mxu0
          %1726 = vmatpush.bf16.msra.mxu0 %v1621
          %1727 = vmatpush.bf16.msra.mxu0 %v1619
          %1728 = vmatpush.bf16.msra.mxu0 %v1617
          %1729 = vmatpush.bf16.msra.mxu0 %v1615
          %1730 = vmatpush.bf16.msra.mxu0 %v1613
          %1731 = vmatpush.bf16.msra.mxu0 %v1611
          %1732 = vmatpush.bf16.msra.mxu0 %v1609
          %1733 = vmatpush.bf16.msra.mxu0 %v1607
          %1734 = vmatmul.bf16.gmra.mxu0 %v1302
          %v1735 = vpop.f32.mrf.mxu0
          %v1736 = vadd.f32 %v1723, %v1735
          %v1737 = vpop.f32.mrf.mxu0
          %1738 = vdwg.mxu0
          %1739 = vmatpush.bf16.msra.mxu0 %v1574
          %1740 = vmatpush.bf16.msra.mxu0 %v1572
          %1741 = vmatpush.bf16.msra.mxu0 %v1570
          %1742 = vmatpush.bf16.msra.mxu0 %v1568
          %1743 = vmatpush.bf16.msra.mxu0 %v1566
          %1744 = vmatpush.bf16.msra.mxu0 %v1564
          %1745 = vmatpush.bf16.msra.mxu0 %v1562
          %1746 = vmatpush.bf16.msra.mxu0 %v1560
          %1747 = vmatmul.bf16.gmra.mxu0 %v1299
          %v1748 = vpop.f32.mrf.mxu0
          %v1749 = vadd.f32 0.0, %v1748
          %v1750 = vpop.f32.mrf.mxu0
          %1751 = vdwg.mxu0
          %1752 = vmatpush.bf16.msra.mxu0 %v1590
          %1753 = vmatpush.bf16.msra.mxu0 %v1588
          %1754 = vmatpush.bf16.msra.mxu0 %v1586
          %1755 = vmatpush.bf16.msra.mxu0 %v1584
          %1756 = vmatpush.bf16.msra.mxu0 %v1582
          %1757 = vmatpush.bf16.msra.mxu0 %v1580
          %1758 = vmatpush.bf16.msra.mxu0 %v1578
          %1759 = vmatpush.bf16.msra.mxu0 %v1576
          %1760 = vmatmul.bf16.gmra.mxu0 %v1300
          %v1761 = vpop.f32.mrf.mxu0
          %v1762 = vadd.f32 %v1749, %v1761
          %v1763 = vpop.f32.mrf.mxu0
          %1764 = vdwg.mxu0
          %1765 = vmatpush.bf16.msra.mxu0 %v1606
          %1766 = vmatpush.bf16.msra.mxu0 %v1604
          %1767 = vmatpush.bf16.msra.mxu0 %v1602
          %1768 = vmatpush.bf16.msra.mxu0 %v1600
          %1769 = vmatpush.bf16.msra.mxu0 %v1598
          %1770 = vmatpush.bf16.msra.mxu0 %v1596
          %1771 = vmatpush.bf16.msra.mxu0 %v1594
          %1772 = vmatpush.bf16.msra.mxu0 %v1592
          %1773 = vmatmul.bf16.gmra.mxu0 %v1301
          %v1774 = vpop.f32.mrf.mxu0
          %v1775 = vadd.f32 %v1762, %v1774
          %v1776 = vpop.f32.mrf.mxu0
          %1777 = vdwg.mxu0
          %1778 = vmatpush.bf16.msra.mxu0 %v1622
          %1779 = vmatpush.bf16.msra.mxu0 %v1620
          %1780 = vmatpush.bf16.msra.mxu0 %v1618
          %1781 = vmatpush.bf16.msra.mxu0 %v1616
          %1782 = vmatpush.bf16.msra.mxu0 %v1614
          %1783 = vmatpush.bf16.msra.mxu0 %v1612
          %1784 = vmatpush.bf16.msra.mxu0 %v1610
          %1785 = vmatpush.bf16.msra.mxu0 %v1608
          %1786 = vmatmul.bf16.gmra.mxu0 %v1302
          %v1787 = vpop.f32.mrf.mxu0
          %v1788 = vadd.f32 %v1775, %v1787
          %v1789 = vpop.f32.mrf.mxu0
          %1790 = vdwg.mxu0
          %1791 = vst [vmem:[%s287] sm:$0xff] %v1736
          %1792 = vst [vmem:[%s287 + $0x8] sm:$0xff] %v1788
        $region48: #{multi_level_classifier.1} parent=31 // pred_fallthru
          _
        %p1793 = scmp.lt.s32.totalorder %s23, 1
        %s1794 = scalar_select %p1793, %s23, 1
        %p1795 = scmp.lt.s32.totalorder %s24, 0
        %s1796 = scalar_select %p1795, %s24, 0
        %s1797 = smul.addr %s1796, 2
        %s1798 = smul.addr %s1794, 2
        %s1799 = sadd.s32 %s1797, %s1798
        %s1800 = smul.addr %s1799, 8
        %s1801 = scalar_lea.vmem %s3, %s1800
        // Predicated region
        $region49: #{multi_level_classifier.1} parent=31 // pred_check
          %p1802 = pneg %p136
        $region50: #{multi_level_classifier.1} parent=31 // pred_check_branch
          %1804 = sbr.rel (%p1802) target = $region52
        $region51: #{multi_level_classifier.1} parent=31 // pred_region
          _
        $region52: #{multi_level_classifier.1} parent=31 // pred_fallthru
          _
      $region32: #{multi_level_classifier.1} parent=5 // pred_fallthru
        _
      %p1805 = scmp.le.s32.totalorder 2, %s13
      // Predicated region
      $region53: #{multi_level_classifier.1} parent=5 // pred_check
        %p1806 = pneg %p1805
      $region54: #{multi_level_classifier.1} parent=5 // pred_check_branch
        %1808 = sbr.rel (%p1806) target = $region56
      $region55: #{multi_level_classifier.1} parent=5 // pred_region
        %s1809 = ssub.s32 %s13, 2
        // Predicated region
        $region57: #{multi_level_classifier.1} parent=55 // pred_check
          %p1810 = pneg %p142
        $region58: #{multi_level_classifier.1} parent=55 // pred_check_branch
          %1812 = sbr.rel (%p1810) target = $region60
        $region59: #{multi_level_classifier.1} parent=55 // pred_region
          %p1813 = scmp.lt.s32.totalorder %s26, 1
          %s1814 = scalar_select %p1813, %s26, 1
          %p1815 = scmp.lt.s32.totalorder %s27, 0
          %s1816 = scalar_select %p1815, %s27, 0
          %s1817 = smul.addr %s1816, 2
          %s1818 = smul.addr %s1814, 2
          %s1819 = sadd.s32 %s1817, %s1818
          %s1820 = smul.addr %s1819, 8
          %s1821 = scalar_lea.vmem %s3, %s1820
        $region60: #{multi_level_classifier.1} parent=55 // pred_fallthru
          _
      $region56: #{multi_level_classifier.1} parent=5 // pred_fallthru
        _
    $region6: #{multi_level_classifier.1} parent=1 // loop_footer
      %s17 = sadd.s32 1, %s13
    $region7: #{multi_level_classifier.1} parent=1 // loop_footer_branch
      %12 = sbr.rel target = $region3
    $region8: #{multi_level_classifier.1} parent=1 // loop_exit
      _
    %1822 = vsyncpa [#allocation4], 1
    %s1823 = scalar_lea.sflag [#allocation4], 1
    %1824 = vsyncpa %s1823, 1
    %1825 = vsyncpa [#allocation6], 1

</llo_original>
